<compile_context>
chip_gen: v7x
topology: tpu7x:2x2x1
jax: 0.10.0
libtpu: 0.0.40
codegen_flags: <defaults>
</compile_context>

<pallas_src>
import functools
from typing import Any, NamedTuple

import jax
import jax.numpy as jnp
from jax.experimental import pallas as pl
from jax.experimental.pallas import tpu as pltpu

LANE = 128      # lane width (last dim)
SUBLANE = 8     # sublane width (second-to-last dim), f32


def _round_up(n, m):
    return ((n + m - 1) // m) * m


def _vmem_budget_bytes():
    """Conservative per-TensorCore VMEM budget for the fully-resident path."""
    try:
        cap = pltpu.get_tpu_info().vmem_capacity_bytes
    except Exception:
        cap = 64 << 20  # v7x per-TC VMEM (smallest of v5e/v6e/v7x)
    return int(cap * 0.75)


# ---------------------------------------------------------------------------
# Fused kernel: the whole autoencoder on one batch tile.
#   refs = (x_ref, w0, b0, w1, b1, ..., o_ref)
# Layer loop is unrolled at trace time; activations stay on-chip.
# ---------------------------------------------------------------------------
def _ae_fused_kernel(*refs, num_layers: int, relu_flags: tuple, compute_dtype):
    x_ref = refs[0]
    o_ref = refs[1 + 2 * num_layers]

    h = x_ref[...].astype(jnp.float32)
    for l in range(num_layers):
        w_ref = refs[1 + 2 * l]
        b_ref = refs[2 + 2 * l]
        # MXU matmul: bf16 operands (MXU-native) when compute_dtype == bf16,
        # always with f32 accumulation.
        h = jnp.dot(h.astype(compute_dtype), w_ref[...],
                    preferred_element_type=jnp.float32)
        # Bias + ReLU on the f32 accumulator (VPU f32; v5e has no bf16 VALU).
        h = h + b_ref[...]
        if relu_flags[l]:
            h = jnp.maximum(h, 0.0)
    o_ref[...] = h.astype(o_ref.dtype)


# ---------------------------------------------------------------------------
# Tiled-linear fallback kernel (P1 + P3): used when resident weights would
# exceed the VMEM budget (matters most on v7x's 64 MiB VMEM).
# ---------------------------------------------------------------------------
def _linear_tiled_kernel(x_ref, w_ref, b_ref, o_ref, acc_ref, *,
                         apply_relu: bool, compute_dtype):
    @pl.when(pl.program_id(2) == 0)
    def _():
        acc_ref[...] = jnp.zeros_like(acc_ref)

    acc_ref[...] += jnp.dot(x_ref[...].astype(compute_dtype), w_ref[...],
                            preferred_element_type=jnp.float32)

    @pl.when(pl.program_id(2) == pl.num_programs(2) - 1)
    def _():
        r = acc_ref[...] + b_ref[...]
        if apply_relu:
            r = jnp.maximum(r, 0.0)
        o_ref[...] = r.astype(o_ref.dtype)


# ---------------------------------------------------------------------------
# Parameter preparation (hoisted off the hot path, do ONCE and cache).
# ---------------------------------------------------------------------------
class PreparedAE(NamedTuple):
    padded_params: tuple   # (W0, b0, W1, b1, ...), W in compute_dtype, b in f32
    dims: tuple            # unpadded feature chain dim_x -> ... -> dim_x
    dims_p: tuple          # lane-padded (multiple of 128) feature dims
    relu_flags: tuple
    compute_dtype: Any


def prepare_ae_params(encoder_layers, decoder_layers, use_bf16=True):
    """Zero-pad (and optionally bf16-cast) all weights/biases once.

    Zero padding is exact: padded lanes carry 0 through matmul, zero bias and
    ReLU, so the wrapper's final slice recovers the unpadded result.  This
    invariant relies on the activation being zero-preserving (ReLU is).
    """
    layers = list(encoder_layers) + list(decoder_layers)
    n_enc = len(encoder_layers)
    num_layers = len(layers)
    # ReLU after every layer except the final encoder projection (-> dim_z)
    # and the final decoder projection (-> dim_x) — matches AE_base.
    relu_flags = tuple(not (i == n_enc - 1 or i == num_layers - 1)
                       for i in range(num_layers))

    dim_x = layers[0][0].shape[0]
    dims = (dim_x,) + tuple(W.shape[1] for (W, _) in layers)
    dims_p = tuple(_round_up(d, LANE) for d in dims)

    compute_dtype = jnp.bfloat16 if use_bf16 else jnp.float32
    padded = []
    for i, (W, b) in enumerate(layers):
        In, Out = W.shape
        Wp = (jnp.zeros((dims_p[i], dims_p[i + 1]), compute_dtype)
              .at[:In, :Out].set(W.astype(compute_dtype)))
        bp = (jnp.zeros((1, dims_p[i + 1]), jnp.float32)
              .at[0, :Out].set(b.astype(jnp.float32)))
        padded += [Wp, bp]
    return PreparedAE(tuple(padded), dims, dims_p, relu_flags, compute_dtype)


# ---------------------------------------------------------------------------
# Fused single-pallas_call forward (weights resident in VMEM).
# ---------------------------------------------------------------------------
def _fused_forward(x_p, prepared, *, TB, vmem_limit, single_buffer_weights,
                   out_dtype):
    dims_p = prepared.dims_p
    num_layers = len(prepared.relu_flags)
    B_pad = x_p.shape[0]
    num_tiles = B_pad // TB

    # Resident weights: constant index_map; single-buffer them when supported
    # (double-buffering an unchanging block only wastes VMEM).
    w_kwargs = dict(pipeline_mode=pl.Buffered(1)) if single_buffer_weights else {}

    in_specs = [pl.BlockSpec((TB, dims_p[0]), lambda i: (i, 0))]
    for l in range(num_layers):
        in_specs.append(pl.BlockSpec((dims_p[l], dims_p[l + 1]),
                                     lambda i: (0, 0), **w_kwargs))
        in_specs.append(pl.BlockSpec((1, dims_p[l + 1]),
                                     lambda i: (0, 0), **w_kwargs))
    out_specs = pl.BlockSpec((TB, dims_p[-1]), lambda i: (i, 0))

    w_bytes = 2 if prepared.compute_dtype == jnp.bfloat16 else 4
    flops = 2 * B_pad * sum(dims_p[i] * dims_p[i + 1] for i in range(num_layers))
    bytes_accessed = (4 * B_pad * (dims_p[0] + dims_p[-1])
                      + sum(w_bytes * dims_p[i] * dims_p[i + 1] + 4 * dims_p[i + 1]
                            for i in range(num_layers)))
    cost = pl.CostEstimate(flops=int(flops), transcendentals=0,
                           bytes_accessed=int(bytes_accessed))

    kernel = functools.partial(_ae_fused_kernel, num_layers=num_layers,
                               relu_flags=prepared.relu_flags,
                               compute_dtype=prepared.compute_dtype)

    # TODO(synk): on v7x, if profiling shows only one TensorCore busy on the
    # batch axis, switch it to pltpu.CORE_PARALLEL (weights replicated per TC).
    return pl.pallas_call(
        kernel,
        out_shape=jax.ShapeDtypeStruct((B_pad, dims_p[-1]), out_dtype),
        grid_spec=pltpu.PrefetchScalarGridSpec(
            num_scalar_prefetch=0,
            grid=(num_tiles,),
            in_specs=in_specs,
            out_specs=out_specs,
        ),
        compiler_params=pltpu.CompilerParams(
            dimension_semantics=("parallel",),
            vmem_limit_bytes=vmem_limit,
        ),
        cost_estimate=cost,
    )(x_p, *prepared.padded_params)


# ---------------------------------------------------------------------------
# Per-layer tiled fallback (for configs whose weights don't fit VMEM).
# ---------------------------------------------------------------------------
def _pick_tile(dim, prefs):
    for p in prefs:
        if dim % p == 0:
            return p
    return dim


def _tiled_linear(h, Wp, bp, apply_relu, compute_dtype, out_dtype):
    M, K = h.shape
    _, N = Wp.shape
    tm = _pick_tile(M, (256, 128))
    tn = _pick_tile(N, (512, 256, 128))
    tk = _pick_tile(K, (512, 256, 128))

    kernel = functools.partial(_linear_tiled_kernel, apply_relu=apply_relu,
                               compute_dtype=compute_dtype)
    return pl.pallas_call(
        kernel,
        out_shape=jax.ShapeDtypeStruct((M, N), out_dtype),
        grid_spec=pltpu.PrefetchScalarGridSpec(
            num_scalar_prefetch=0,
            grid=(M // tm, N // tn, K // tk),
            in_specs=[pl.BlockSpec((tm, tk), lambda i, j, k: (i, k)),
                      pl.BlockSpec((tk, tn), lambda i, j, k: (k, j)),
                      pl.BlockSpec((1, tn), lambda i, j, k: (0, j))],
            out_specs=pl.BlockSpec((tm, tn), lambda i, j, k: (i, j)),
            scratch_shapes=[pltpu.VMEM((tm, tn), jnp.float32)],
        ),
        compiler_params=pltpu.CompilerParams(
            dimension_semantics=("parallel", "parallel", "arbitrary"),
        ),
    )(h, Wp, bp)


# ---------------------------------------------------------------------------
# Forward: decoder(encoder(x))
# ---------------------------------------------------------------------------
def ae_forward(x, prepared: PreparedAE, *, force_tiled: bool = False):
    B, dx = x.shape
    dims, dims_p = prepared.dims, prepared.dims_p
    assert dx == dims[0], "input feature dim mismatch"
    num_layers = len(prepared.relu_flags)
    w_bytes = 2 if prepared.compute_dtype == jnp.bfloat16 else 4

    budget = _vmem_budget_bytes()

    def fused_footprint(tb, weight_bufs):
        wb = sum(dims_p[i] * dims_p[i + 1] * w_bytes + dims_p[i + 1] * 4
                 for i in range(num_layers)) * weight_bufs
        io = 2 * tb * (dims_p[0] + dims_p[-1]) * 4    # double-buffered x/out tiles
        act = 2 * tb * max(dims_p) * 4                # live activation + matmul result
        return wb + io + act

    # Batch tile: fill the 256-wide MXU (v6e/v7x) when batch and VMEM allow;
    # 128 (v5e MXU-native) otherwise; one padded tile for small batches.
    if B >= 256 and fused_footprint(256, 1) <= budget:
        TB = 256
    elif B >= 128:
        TB = 128
    else:
        TB = _round_up(B, SUBLANE)

    B_pad = _round_up(B, TB)

    # Skip the input pad (an extra HBM pass over x) when already aligned.
    if B_pad == B and dims_p[0] == dims[0]:
        x_p = x
    else:
        x_p = jnp.zeros((B_pad, dims_p[0]), x.dtype).at[:B, :dims[0]].set(x)

    use_fused = (not force_tiled) and fused_footprint(TB, 1) <= budget
    if use_fused:
        vmem_limit = max(32 << 20,
                         min(int(fused_footprint(TB, 2) * 1.25), 96 << 20))
        try:
            out_p = _fused_forward(x_p, prepared, TB=TB, vmem_limit=vmem_limit,
                                   single_buffer_weights=True, out_dtype=x.dtype)
        except Exception:
            # pipeline_mode / pl.Buffered(1) unsupported -> default buffering.
            out_p = _fused_forward(x_p, prepared, TB=TB, vmem_limit=vmem_limit,
                                   single_buffer_weights=False, out_dtype=x.dtype)
    else:
        # Weights too large to hold resident: per-layer tiled matmul with a
        # K-reduction accumulator grid.  Activations round-trip HBM per layer.
        h = x_p
        for l in range(num_layers):
            Wp = prepared.padded_params[2 * l]
            bp = prepared.padded_params[2 * l + 1]
            last = (l == num_layers - 1)
            h = _tiled_linear(h, Wp, bp, prepared.relu_flags[l],
                              prepared.compute_dtype,
                              x.dtype if last else jnp.float32)
        out_p = h

    # Skip the output slice (another HBM pass) when already aligned.
    if B_pad == B and dims_p[-1] == dims[-1]:
        return out_p
    return out_p[:B, :dims[-1]]


# ---------------------------------------------------------------------------
# Parameter construction (deterministic, mirrors AE_base.__init__ shapes).
# Weights stored as (in_features, out_features): y = x @ W + b.
# ---------------------------------------------------------------------------
def init_ae_params(key, dim_x, dim_z, hidden_dims):
    H = len(hidden_dims)
    encode_dim = dim_x if H == 0 else hidden_dims[-1]
    decode_dim = dim_z if H == 0 else hidden_dims[0]

    def make_linear(k, in_dim, out_dim):
        kw, kb = jax.random.split(k)
        bound = 1.0 / jnp.sqrt(jnp.float32(in_dim))
        W = jax.random.uniform(kw, (in_dim, out_dim), jnp.float32, -bound, bound)
        bias = jax.random.uniform(kb, (out_dim,), jnp.float32, -bound, bound)
        return W, bias

    keys = jax.random.split(key, 2 * (H + 1))
    ki = 0

    encoder = []
    for h, out_dim in enumerate(hidden_dims):
        in_dim = dim_x if h == 0 else hidden_dims[h - 1]
        encoder.append(make_linear(keys[ki], in_dim, out_dim)); ki += 1
    encoder.append(make_linear(keys[ki], encode_dim, dim_z)); ki += 1

    decoder = []
    rev = hidden_dims[::-1]
    for h, out_dim in enumerate(rev):
        in_dim = dim_z if h == 0 else rev[h - 1]
        decoder.append(make_linear(keys[ki], in_dim, out_dim)); ki += 1
    decoder.append(make_linear(keys[ki], decode_dim, dim_x)); ki += 1

    return encoder, decoder


# ---------------------------------------------------------------------------
# Reference (pure JAX) for sanity check
# ---------------------------------------------------------------------------
def ae_forward_ref(x, encoder_layers, decoder_layers):
    h = x
    for i, (W, b) in enumerate(encoder_layers):
        h = h @ W + b
        if i != len(encoder_layers) - 1:
            h = jnp.maximum(h, 0.0)
    for i, (W, b) in enumerate(decoder_layers):
        h = h @ W + b
        if i != len(decoder_layers) - 1:
            h = jnp.maximum(h, 0.0)
    return h


if __name__ == "__main__":
    # Small, module-consistent shapes: dim_x=64, hidden_dims=[32], dim_z=16, batch=8
    dim_x, dim_z = 64, 16
    hidden_dims = [32]
    batch = 8

    key = jax.random.PRNGKey(0)
    kx, kp = jax.random.split(key)
    x = jax.random.normal(kx, (batch, dim_x), dtype=jnp.float32)
    encoder_layers, decoder_layers = init_ae_params(kp, dim_x, dim_z, hidden_dims)
    x_ref = ae_forward_ref(x, encoder_layers, decoder_layers)

    # 1) f32 validation path (exact vs reference)
    prep_f32 = prepare_ae_params(encoder_layers, decoder_layers, use_bf16=False)
    y_f32 = jax.block_until_ready(ae_forward(x, prep_f32))
    assert y_f32.shape == (batch, dim_x)
    assert jnp.allclose(y_f32, x_ref, atol=1e-5, rtol=1e-5), "f32 fused mismatch"

    # 2) bf16-operand fused path (MXU-native perf mode, looser tolerance)
    prep_bf16 = prepare_ae_params(encoder_layers, decoder_layers, use_bf16=True)
    y_bf16 = jax.block_until_ready(ae_forward(x, prep_bf16))
    assert jnp.allclose(y_bf16, x_ref, atol=1e-1, rtol=1e-1), "bf16 fused mismatch"

    # 3) tiled fallback path (used automatically when weights exceed VMEM)
    y_tiled = jax.block_until_ready(ae_forward(x, prep_f32, force_tiled=True))
    assert jnp.allclose(y_tiled, x_ref, atol=1e-5, rtol=1e-5), "tiled mismatch"

    # 4) already-aligned shapes: exercises the no-pad / no-slice fast path
    dim_x2, dim_z2, hidden2, batch2 = 128, 128, [128], 8
    x2 = jax.random.normal(jax.random.PRNGKey(1), (batch2, dim_x2), jnp.float32)
    enc2, dec2 = init_ae_params(jax.random.PRNGKey(2), dim_x2, dim_z2, hidden2)
    prep2 = prepare_ae_params(enc2, dec2, use_bf16=False)
    y2 = jax.block_until_ready(ae_forward(x2, prep2))
    assert jnp.allclose(y2, ae_forward_ref(x2, enc2, dec2), atol=1e-5, rtol=1e-5), \
        "aligned fast-path mismatch"

    print("KERNEL_OK")
</pallas_src>

<mosaic_0001>
module attributes {stable_mosaic.version = 11 : i64} {
  func.func @_ae_fused_kernel(%arg0: i32, %arg1: memref<8x128xf32, #tpu.memory_space<vmem>>, %arg2: memref<128x128xf32, #tpu.memory_space<vmem>>, %arg3: memref<1x128xf32, #tpu.memory_space<vmem>>, %arg4: memref<128x128xf32, #tpu.memory_space<vmem>>, %arg5: memref<1x128xf32, #tpu.memory_space<vmem>>, %arg6: memref<128x128xf32, #tpu.memory_space<vmem>>, %arg7: memref<1x128xf32, #tpu.memory_space<vmem>>, %arg8: memref<128x128xf32, #tpu.memory_space<vmem>>, %arg9: memref<1x128xf32, #tpu.memory_space<vmem>>, %arg10: memref<8x128xf32, #tpu.memory_space<vmem>>) attributes {dimension_semantics = [#tpu.dimension_semantics<parallel>], iteration_bounds = array<i64: 1>, scalar_prefetch = 0 : i64, scratch_operands = 0 : i64, tpu.core_type = #tpu.core_type<tc>, window_params = [{transform_indices = @transform_0, window_bounds = array<i64: 8, 128>}, {pipeline_mode = #tpu.pipeline_mode<synchronous>, transform_indices = @transform_1, window_bounds = array<i64: 128, 128>}, {pipeline_mode = #tpu.pipeline_mode<synchronous>, transform_indices = @transform_2, window_bounds = array<i64: 1, 128>}, {pipeline_mode = #tpu.pipeline_mode<synchronous>, transform_indices = @transform_3, window_bounds = array<i64: 128, 128>}, {pipeline_mode = #tpu.pipeline_mode<synchronous>, transform_indices = @transform_4, window_bounds = array<i64: 1, 128>}, {pipeline_mode = #tpu.pipeline_mode<synchronous>, transform_indices = @transform_5, window_bounds = array<i64: 128, 128>}, {pipeline_mode = #tpu.pipeline_mode<synchronous>, transform_indices = @transform_6, window_bounds = array<i64: 1, 128>}, {pipeline_mode = #tpu.pipeline_mode<synchronous>, transform_indices = @transform_7, window_bounds = array<i64: 128, 128>}, {pipeline_mode = #tpu.pipeline_mode<synchronous>, transform_indices = @transform_8, window_bounds = array<i64: 1, 128>}, {transform_indices = @transform_9, window_bounds = array<i64: 8, 128>}]} {
    %c0 = arith.constant 0 : index
    %c0_0 = arith.constant 0 : index
    %0 = vector.load %arg1[%c0, %c0_0] : memref<8x128xf32, #tpu.memory_space<vmem>>, vector<8x128xf32>
    %c0_1 = arith.constant 0 : index
    %c0_2 = arith.constant 0 : index
    %1 = vector.load %arg2[%c0_1, %c0_2] : memref<128x128xf32, #tpu.memory_space<vmem>>, vector<128x128xf32>
    %cst = arith.constant dense<0.000000e+00> : vector<8x128xf32>
    %2 = tpu.matmul %0, %1, %cst {dimension_numbers = #tpu.dot_dimension_numbers<[1], [0], [0], [1], [0, 0, 1, 1], [], []>} : vector<8x128xf32>, vector<128x128xf32>, vector<8x128xf32> -> vector<8x128xf32>
    %c0_3 = arith.constant 0 : index
    %c0_4 = arith.constant 0 : index
    %3 = vector.load %arg3[%c0_3, %c0_4] : memref<1x128xf32, #tpu.memory_space<vmem>>, vector<1x128xf32>
    %4 = vector.broadcast %3 : vector<1x128xf32> to vector<8x128xf32>
    %5 = arith.addf %2, %4 : vector<8x128xf32>
    %cst_5 = arith.constant 0.000000e+00 : f32
    %6 = vector.broadcast %cst_5 : f32 to vector<8x128xf32>
    %7 = arith.maximumf %5, %6 : vector<8x128xf32>
    %c0_6 = arith.constant 0 : index
    %c0_7 = arith.constant 0 : index
    %8 = vector.load %arg4[%c0_6, %c0_7] : memref<128x128xf32, #tpu.memory_space<vmem>>, vector<128x128xf32>
    %cst_8 = arith.constant dense<0.000000e+00> : vector<8x128xf32>
    %9 = tpu.matmul %7, %8, %cst_8 {dimension_numbers = #tpu.dot_dimension_numbers<[1], [0], [0], [1], [0, 0, 1, 1], [], []>} : vector<8x128xf32>, vector<128x128xf32>, vector<8x128xf32> -> vector<8x128xf32>
    %c0_9 = arith.constant 0 : index
    %c0_10 = arith.constant 0 : index
    %10 = vector.load %arg5[%c0_9, %c0_10] : memref<1x128xf32, #tpu.memory_space<vmem>>, vector<1x128xf32>
    %11 = vector.broadcast %10 : vector<1x128xf32> to vector<8x128xf32>
    %12 = arith.addf %9, %11 : vector<8x128xf32>
    %c0_11 = arith.constant 0 : index
    %c0_12 = arith.constant 0 : index
    %13 = vector.load %arg6[%c0_11, %c0_12] : memref<128x128xf32, #tpu.memory_space<vmem>>, vector<128x128xf32>
    %cst_13 = arith.constant dense<0.000000e+00> : vector<8x128xf32>
    %14 = tpu.matmul %12, %13, %cst_13 {dimension_numbers = #tpu.dot_dimension_numbers<[1], [0], [0], [1], [0, 0, 1, 1], [], []>} : vector<8x128xf32>, vector<128x128xf32>, vector<8x128xf32> -> vector<8x128xf32>
    %c0_14 = arith.constant 0 : index
    %c0_15 = arith.constant 0 : index
    %15 = vector.load %arg7[%c0_14, %c0_15] : memref<1x128xf32, #tpu.memory_space<vmem>>, vector<1x128xf32>
    %16 = vector.broadcast %15 : vector<1x128xf32> to vector<8x128xf32>
    %17 = arith.addf %14, %16 : vector<8x128xf32>
    %cst_16 = arith.constant 0.000000e+00 : f32
    %18 = vector.broadcast %cst_16 : f32 to vector<8x128xf32>
    %19 = arith.maximumf %17, %18 : vector<8x128xf32>
    %c0_17 = arith.constant 0 : index
    %c0_18 = arith.constant 0 : index
    %20 = vector.load %arg8[%c0_17, %c0_18] : memref<128x128xf32, #tpu.memory_space<vmem>>, vector<128x128xf32>
    %cst_19 = arith.constant dense<0.000000e+00> : vector<8x128xf32>
    %21 = tpu.matmul %19, %20, %cst_19 {dimension_numbers = #tpu.dot_dimension_numbers<[1], [0], [0], [1], [0, 0, 1, 1], [], []>} : vector<8x128xf32>, vector<128x128xf32>, vector<8x128xf32> -> vector<8x128xf32>
    %c0_20 = arith.constant 0 : index
    %c0_21 = arith.constant 0 : index
    %22 = vector.load %arg9[%c0_20, %c0_21] : memref<1x128xf32, #tpu.memory_space<vmem>>, vector<1x128xf32>
    %23 = vector.broadcast %22 : vector<1x128xf32> to vector<8x128xf32>
    %24 = arith.addf %21, %23 : vector<8x128xf32>
    %c0_22 = arith.constant 0 : index
    %c0_23 = arith.constant 0 : index
    %25 = vector.load %arg10[%c0_22, %c0_23] : memref<8x128xf32, #tpu.memory_space<vmem>>, vector<8x128xf32>
    tpu.vector_store %arg10[%c0_22, %c0_23], %24 {strides = array<i32>} : memref<8x128xf32, #tpu.memory_space<vmem>>, vector<8x128xf32>,
    return
  }
  func.func @transform_0(%arg0: i32) -> (i32, i32) {
    %c0_i32 = arith.constant 0 : i32
    %c0_i32_0 = arith.constant 0 : i32
    return %arg0, %c0_i32 : i32, i32
  }
  func.func @transform_1(%arg0: i32) -> (i32, i32) {
    %c0_i32 = arith.constant 0 : i32
    %c0_i32_0 = arith.constant 0 : i32
    %c0_i32_1 = arith.constant 0 : i32
    return %c0_i32, %c0_i32_0 : i32, i32
  }
  func.func @transform_2(%arg0: i32) -> (i32, i32) {
    %c0_i32 = arith.constant 0 : i32
    %c0_i32_0 = arith.constant 0 : i32
    %c0_i32_1 = arith.constant 0 : i32
    return %c0_i32, %c0_i32_0 : i32, i32
  }
  func.func @transform_3(%arg0: i32) -> (i32, i32) {
    %c0_i32 = arith.constant 0 : i32
    %c0_i32_0 = arith.constant 0 : i32
    %c0_i32_1 = arith.constant 0 : i32
    return %c0_i32, %c0_i32_0 : i32, i32
  }
  func.func @transform_4(%arg0: i32) -> (i32, i32) {
    %c0_i32 = arith.constant 0 : i32
    %c0_i32_0 = arith.constant 0 : i32
    %c0_i32_1 = arith.constant 0 : i32
    return %c0_i32, %c0_i32_0 : i32, i32
  }
  func.func @transform_5(%arg0: i32) -> (i32, i32) {
    %c0_i32 = arith.constant 0 : i32
    %c0_i32_0 = arith.constant 0 : i32
    %c0_i32_1 = arith.constant 0 : i32
    return %c0_i32, %c0_i32_0 : i32, i32
  }
  func.func @transform_6(%arg0: i32) -> (i32, i32) {
    %c0_i32 = arith.constant 0 : i32
    %c0_i32_0 = arith.constant 0 : i32
    %c0_i32_1 = arith.constant 0 : i32
    return %c0_i32, %c0_i32_0 : i32, i32
  }
  func.func @transform_7(%arg0: i32) -> (i32, i32) {
    %c0_i32 = arith.constant 0 : i32
    %c0_i32_0 = arith.constant 0 : i32
    %c0_i32_1 = arith.constant 0 : i32
    return %c0_i32, %c0_i32_0 : i32, i32
  }
  func.func @transform_8(%arg0: i32) -> (i32, i32) {
    %c0_i32 = arith.constant 0 : i32
    %c0_i32_0 = arith.constant 0 : i32
    %c0_i32_1 = arith.constant 0 : i32
    return %c0_i32, %c0_i32_0 : i32, i32
  }
  func.func @transform_9(%arg0: i32) -> (i32, i32) {
    %c0_i32 = arith.constant 0 : i32
    %c0_i32_0 = arith.constant 0 : i32
    return %arg0, %c0_i32 : i32, i32
  }
}

module attributes {stable_mosaic.version = 11 : i64} {
  func.func @_ae_fused_kernel(%arg0: i32, %arg1: memref<8x128xf32, #tpu.memory_space<vmem>>, %arg2: memref<128x128xf32, #tpu.memory_space<vmem>>, %arg3: memref<1x128xf32, #tpu.memory_space<vmem>>, %arg4: memref<128x128xf32, #tpu.memory_space<vmem>>, %arg5: memref<1x128xf32, #tpu.memory_space<vmem>>, %arg6: memref<128x128xf32, #tpu.memory_space<vmem>>, %arg7: memref<1x128xf32, #tpu.memory_space<vmem>>, %arg8: memref<128x128xf32, #tpu.memory_space<vmem>>, %arg9: memref<1x128xf32, #tpu.memory_space<vmem>>, %arg10: memref<8x128xf32, #tpu.memory_space<vmem>>) attributes {dimension_semantics = [#tpu.dimension_semantics<parallel>], iteration_bounds = array<i64: 1>, scalar_prefetch = 0 : i64, scratch_operands = 0 : i64, tpu.core_type = #tpu.core_type<tc>, window_params = [{transform_indices = @transform_0, window_bounds = array<i64: 8, 128>}, {pipeline_mode = #tpu.pipeline_mode<synchronous>, transform_indices = @transform_1, window_bounds = array<i64: 128, 128>}, {pipeline_mode = #tpu.pipeline_mode<synchronous>, transform_indices = @transform_2, window_bounds = array<i64: 1, 128>}, {pipeline_mode = #tpu.pipeline_mode<synchronous>, transform_indices = @transform_3, window_bounds = array<i64: 128, 128>}, {pipeline_mode = #tpu.pipeline_mode<synchronous>, transform_indices = @transform_4, window_bounds = array<i64: 1, 128>}, {pipeline_mode = #tpu.pipeline_mode<synchronous>, transform_indices = @transform_5, window_bounds = array<i64: 128, 128>}, {pipeline_mode = #tpu.pipeline_mode<synchronous>, transform_indices = @transform_6, window_bounds = array<i64: 1, 128>}, {pipeline_mode = #tpu.pipeline_mode<synchronous>, transform_indices = @transform_7, window_bounds = array<i64: 128, 128>}, {pipeline_mode = #tpu.pipeline_mode<synchronous>, transform_indices = @transform_8, window_bounds = array<i64: 1, 128>}, {transform_indices = @transform_9, window_bounds = array<i64: 8, 128>}]} {
    %c0 = arith.constant 0 : index
    %c0_0 = arith.constant 0 : index
    %0 = vector.load %arg1[%c0, %c0_0] : memref<8x128xf32, #tpu.memory_space<vmem>>, vector<8x128xf32>
    %c0_1 = arith.constant 0 : index
    %c0_2 = arith.constant 0 : index
    %1 = vector.load %arg2[%c0_1, %c0_2] : memref<128x128xf32, #tpu.memory_space<vmem>>, vector<128x128xf32>
    %cst = arith.constant dense<0.000000e+00> : vector<8x128xf32>
    %2 = tpu.matmul %0, %1, %cst {dimension_numbers = #tpu.dot_dimension_numbers<[1], [0], [0], [1], [0, 0, 1, 1], [], []>} : vector<8x128xf32>, vector<128x128xf32>, vector<8x128xf32> -> vector<8x128xf32>
    %c0_3 = arith.constant 0 : index
    %c0_4 = arith.constant 0 : index
    %3 = vector.load %arg3[%c0_3, %c0_4] : memref<1x128xf32, #tpu.memory_space<vmem>>, vector<1x128xf32>
    %4 = vector.broadcast %3 : vector<1x128xf32> to vector<8x128xf32>
    %5 = arith.addf %2, %4 : vector<8x128xf32>
    %cst_5 = arith.constant 0.000000e+00 : f32
    %6 = vector.broadcast %cst_5 : f32 to vector<8x128xf32>
    %7 = arith.maximumf %5, %6 : vector<8x128xf32>
    %c0_6 = arith.constant 0 : index
    %c0_7 = arith.constant 0 : index
    %8 = vector.load %arg4[%c0_6, %c0_7] : memref<128x128xf32, #tpu.memory_space<vmem>>, vector<128x128xf32>
    %cst_8 = arith.constant dense<0.000000e+00> : vector<8x128xf32>
    %9 = tpu.matmul %7, %8, %cst_8 {dimension_numbers = #tpu.dot_dimension_numbers<[1], [0], [0], [1], [0, 0, 1, 1], [], []>} : vector<8x128xf32>, vector<128x128xf32>, vector<8x128xf32> -> vector<8x128xf32>
    %c0_9 = arith.constant 0 : index
    %c0_10 = arith.constant 0 : index
    %10 = vector.load %arg5[%c0_9, %c0_10] : memref<1x128xf32, #tpu.memory_space<vmem>>, vector<1x128xf32>
    %11 = vector.broadcast %10 : vector<1x128xf32> to vector<8x128xf32>
    %12 = arith.addf %9, %11 : vector<8x128xf32>
    %c0_11 = arith.constant 0 : index
    %c0_12 = arith.constant 0 : index
    %13 = vector.load %arg6[%c0_11, %c0_12] : memref<128x128xf32, #tpu.memory_space<vmem>>, vector<128x128xf32>
    %cst_13 = arith.constant dense<0.000000e+00> : vector<8x128xf32>
    %14 = tpu.matmul %12, %13, %cst_13 {dimension_numbers = #tpu.dot_dimension_numbers<[1], [0], [0], [1], [0, 0, 1, 1], [], []>} : vector<8x128xf32>, vector<128x128xf32>, vector<8x128xf32> -> vector<8x128xf32>
    %c0_14 = arith.constant 0 : index
    %c0_15 = arith.constant 0 : index
    %15 = vector.load %arg7[%c0_14, %c0_15] : memref<1x128xf32, #tpu.memory_space<vmem>>, vector<1x128xf32>
    %16 = vector.broadcast %15 : vector<1x128xf32> to vector<8x128xf32>
    %17 = arith.addf %14, %16 : vector<8x128xf32>
    %cst_16 = arith.constant 0.000000e+00 : f32
    %18 = vector.broadcast %cst_16 : f32 to vector<8x128xf32>
    %19 = arith.maximumf %17, %18 : vector<8x128xf32>
    %c0_17 = arith.constant 0 : index
    %c0_18 = arith.constant 0 : index
    %20 = vector.load %arg8[%c0_17, %c0_18] : memref<128x128xf32, #tpu.memory_space<vmem>>, vector<128x128xf32>
    %cst_19 = arith.constant dense<0.000000e+00> : vector<8x128xf32>
    %21 = tpu.matmul %19, %20, %cst_19 {dimension_numbers = #tpu.dot_dimension_numbers<[1], [0], [0], [1], [0, 0, 1, 1], [], []>} : vector<8x128xf32>, vector<128x128xf32>, vector<8x128xf32> -> vector<8x128xf32>
    %c0_20 = arith.constant 0 : index
    %c0_21 = arith.constant 0 : index
    %22 = vector.load %arg9[%c0_20, %c0_21] : memref<1x128xf32, #tpu.memory_space<vmem>>, vector<1x128xf32>
    %23 = vector.broadcast %22 : vector<1x128xf32> to vector<8x128xf32>
    %24 = arith.addf %21, %23 : vector<8x128xf32>
    %c0_22 = arith.constant 0 : index
    %c0_23 = arith.constant 0 : index
    %25 = vector.load %arg10[%c0_22, %c0_23] : memref<8x128xf32, #tpu.memory_space<vmem>>, vector<8x128xf32>
    tpu.vector_store %arg10[%c0_22, %c0_23], %24 {strides = array<i32>} : memref<8x128xf32, #tpu.memory_space<vmem>>, vector<8x128xf32>,
    return
  }
  func.func @transform_0(%arg0: i32) -> (i32, i32) {
    %c0_i32 = arith.constant 0 : i32
    %c0_i32_0 = arith.constant 0 : i32
    return %arg0, %c0_i32 : i32, i32
  }
  func.func @transform_1(%arg0: i32) -> (i32, i32) {
    %c0_i32 = arith.constant 0 : i32
    %c0_i32_0 = arith.constant 0 : i32
    %c0_i32_1 = arith.constant 0 : i32
    return %c0_i32, %c0_i32_0 : i32, i32
  }
  func.func @transform_2(%arg0: i32) -> (i32, i32) {
    %c0_i32 = arith.constant 0 : i32
    %c0_i32_0 = arith.constant 0 : i32
    %c0_i32_1 = arith.constant 0 : i32
    return %c0_i32, %c0_i32_0 : i32, i32
  }
  func.func @transform_3(%arg0: i32) -> (i32, i32) {
    %c0_i32 = arith.constant 0 : i32
    %c0_i32_0 = arith.constant 0 : i32
    %c0_i32_1 = arith.constant 0 : i32
    return %c0_i32, %c0_i32_0 : i32, i32
  }
  func.func @transform_4(%arg0: i32) -> (i32, i32) {
    %c0_i32 = arith.constant 0 : i32
    %c0_i32_0 = arith.constant 0 : i32
    %c0_i32_1 = arith.constant 0 : i32
    return %c0_i32, %c0_i32_0 : i32, i32
  }
  func.func @transform_5(%arg0: i32) -> (i32, i32) {
    %c0_i32 = arith.constant 0 : i32
    %c0_i32_0 = arith.constant 0 : i32
    %c0_i32_1 = arith.constant 0 : i32
    return %c0_i32, %c0_i32_0 : i32, i32
  }
  func.func @transform_6(%arg0: i32) -> (i32, i32) {
    %c0_i32 = arith.constant 0 : i32
    %c0_i32_0 = arith.constant 0 : i32
    %c0_i32_1 = arith.constant 0 : i32
    return %c0_i32, %c0_i32_0 : i32, i32
  }
  func.func @transform_7(%arg0: i32) -> (i32, i32) {
    %c0_i32 = arith.constant 0 : i32
    %c0_i32_0 = arith.constant 0 : i32
    %c0_i32_1 = arith.constant 0 : i32
    return %c0_i32, %c0_i32_0 : i32, i32
  }
  func.func @transform_8(%arg0: i32) -> (i32, i32) {
    %c0_i32 = arith.constant 0 : i32
    %c0_i32_0 = arith.constant 0 : i32
    %c0_i32_1 = arith.constant 0 : i32
    return %c0_i32, %c0_i32_0 : i32, i32
  }
  func.func @transform_9(%arg0: i32) -> (i32, i32) {
    %c0_i32 = arith.constant 0 : i32
    %c0_i32_0 = arith.constant 0 : i32
    return %arg0, %c0_i32 : i32, i32
  }
}

</mosaic_0001>

<llo_original>
// kernel: tpu_custom_call.1
$region0: #{tpu_custom_call.1}
  #allocation0 [shape = 'u32[]', space=smem, size = 0x4, offset = 0x4, fixed_abs, tag = 'smem constant byte address 0x4 - core index']
  #allocation1 [shape = 'u32[144,128]{1,0:T(1,128)}', space=vmem, size = 0x12000, scoped, tag = 'internal scratch']
  %s0 = inlined_call_operand.hbm [shape: f32[8,128], index: 0, kind: input, shape index: {}]
  %s1 = inlined_call_operand.hbm [shape: f32[128,128], index: 1, kind: input, shape index: {}]
  %s2 = inlined_call_operand.vmem [shape: f32[1,128], index: 2, kind: input, shape index: {}]
  %s3 = inlined_call_operand.hbm [shape: f32[128,128], index: 3, kind: input, shape index: {}]
  %s4 = inlined_call_operand.vmem [shape: f32[1,128], index: 4, kind: input, shape index: {}]
  %s5 = inlined_call_operand.hbm [shape: f32[128,128], index: 5, kind: input, shape index: {}]
  %s6 = inlined_call_operand.vmem [shape: f32[1,128], index: 6, kind: input, shape index: {}]
  %s7 = inlined_call_operand.hbm [shape: f32[128,128], index: 7, kind: input, shape index: {}]
  %s8 = inlined_call_operand.vmem [shape: f32[1,128], index: 8, kind: input, shape index: {}]
  %s9 = inlined_call_operand.hbm [shape: f32[8,128], index: 9, kind: output, shape index: {}]
  %s10 = sld [smem:[#allocation0]]
  $region66: #{tpu_custom_call.1} parent=0
    _
  %s12 = ssub.s32 1, %s10
  %s13 = scalar_select 0, %s12, %s10
  $region1: #{tpu_custom_call.1} parent=0
    #allocation2 [shape = 'u8[4096]{0}', space=vmem, size = 0x1000, scoped, tag = 'input window, operand 0, single buffered']
    #allocation3 [shape = 's32[1]{0}', space=sflag, size = 0x4, scoped, tag = 'scoped memory for tpu_custom_call.1']
    #allocation4 [shape = 's32[1]{0}', space=sflag, size = 0x4, scoped, tag = 'scoped memory for tpu_custom_call.1']
    #allocation5 [shape = 'u8[65536]{0}', space=vmem, size = 0x10000, scoped, tag = 'input window, operand 1, single buffered']
    #allocation6 [shape = 's32[1]{0}', space=sflag, size = 0x4, scoped, tag = 'scoped memory for tpu_custom_call.1']
    #allocation7 [shape = 'u8[65536]{0}', space=vmem, size = 0x10000, scoped, tag = 'input window, operand 3, single buffered']
    #allocation8 [shape = 'u8[65536]{0}', space=vmem, size = 0x10000, scoped, tag = 'input window, operand 5, single buffered']
    #allocation9 [shape = 's32[1]{0}', space=sflag, size = 0x4, scoped, tag = 'scoped memory for tpu_custom_call.1']
    #allocation10 [shape = 'u8[65536]{0}', space=vmem, size = 0x10000, scoped, tag = 'input window, operand 7, single buffered']
    #allocation11 [shape = 'u8[4096]{0}', space=vmem, size = 0x1000, scoped, tag = 'output window, operand 0, single buffered']
    %14 = vsyncpa [#allocation3], 0
    %15 = vsyncpa [#allocation6], 0
    %16 = vsyncpa [#allocation9], 0
    %17 = vsyncpa [#allocation4], 0
    // Predicated region
    $region2: #{tpu_custom_call.1} parent=1 // pred_check
      _
    $region3: #{tpu_custom_call.1} parent=1 // pred_check_branch
      %19 = sbr.rel (0) target = $region5
    $region4: #{tpu_custom_call.1} parent=1 // pred_region
      %s21 = ssub.s32 128, 128
      %22 = vsyncadd [#allocation3], %s21
      %s24 = sshll.u32 [#allocation2], 4
      %s25 = int_to_ptr.vmem [resolvable:$true] %s24
      %27 = dma.hbm_to_vmem [thread:$0]  %s0, 128, %s25, [#allocation3]
    $region5: #{tpu_custom_call.1} parent=1 // pred_fallthru
      _
    // Predicated region
    $region6: #{tpu_custom_call.1} parent=1 // pred_check
      _
    $region7: #{tpu_custom_call.1} parent=1 // pred_check_branch
      %29 = sbr.rel (0) target = $region9
    $region8: #{tpu_custom_call.1} parent=1 // pred_region
      %s31 = ssub.s32 2048, 2048
      %32 = vsyncadd [#allocation6], %s31
      %s33 = sshll.u32 [#allocation5], 4
      %s34 = int_to_ptr.vmem [resolvable:$true] %s33
      %39 = dma.hbm_to_vmem [thread:$0]  %s1, 2048, %s34, [#allocation6], 128, 128, 8
    $region9: #{tpu_custom_call.1} parent=1 // pred_fallthru
      _
    // Predicated region
    $region10: #{tpu_custom_call.1} parent=1 // pred_check
      _
    $region11: #{tpu_custom_call.1} parent=1 // pred_check_branch
      %41 = sbr.rel (0) target = $region13
    $region12: #{tpu_custom_call.1} parent=1 // pred_region
      _
    $region13: #{tpu_custom_call.1} parent=1 // pred_fallthru
      _
    // Predicated region
    $region14: #{tpu_custom_call.1} parent=1 // pred_check
      _
    $region15: #{tpu_custom_call.1} parent=1 // pred_check_branch
      %43 = sbr.rel (0) target = $region17
    $region16: #{tpu_custom_call.1} parent=1 // pred_region
      %s45 = ssub.s32 2048, 2048
      %46 = vsyncadd [#allocation6], %s45
      %s47 = sshll.u32 [#allocation7], 4
      %s48 = int_to_ptr.vmem [resolvable:$true] %s47
      %53 = dma.hbm_to_vmem [thread:$0]  %s3, 2048, %s48, [#allocation6], 128, 128, 8
    $region17: #{tpu_custom_call.1} parent=1 // pred_fallthru
      _
    // Predicated region
    $region18: #{tpu_custom_call.1} parent=1 // pred_check
      _
    $region19: #{tpu_custom_call.1} parent=1 // pred_check_branch
      %55 = sbr.rel (0) target = $region21
    $region20: #{tpu_custom_call.1} parent=1 // pred_region
      _
    $region21: #{tpu_custom_call.1} parent=1 // pred_fallthru
      _
    // Predicated region
    $region22: #{tpu_custom_call.1} parent=1 // pred_check
      _
    $region23: #{tpu_custom_call.1} parent=1 // pred_check_branch
      %57 = sbr.rel (0) target = $region25
    $region24: #{tpu_custom_call.1} parent=1 // pred_region
      %s59 = ssub.s32 2048, 2048
      %60 = vsyncadd [#allocation9], %s59
      %s61 = sshll.u32 [#allocation8], 4
      %s62 = int_to_ptr.vmem [resolvable:$true] %s61
      %67 = dma.hbm_to_vmem [thread:$0]  %s5, 2048, %s62, [#allocation9], 128, 128, 8
    $region25: #{tpu_custom_call.1} parent=1 // pred_fallthru
      _
    // Predicated region
    $region26: #{tpu_custom_call.1} parent=1 // pred_check
      _
    $region27: #{tpu_custom_call.1} parent=1 // pred_check_branch
      %69 = sbr.rel (0) target = $region29
    $region28: #{tpu_custom_call.1} parent=1 // pred_region
      _
    $region29: #{tpu_custom_call.1} parent=1 // pred_fallthru
      _
    // Predicated region
    $region30: #{tpu_custom_call.1} parent=1 // pred_check
      _
    $region31: #{tpu_custom_call.1} parent=1 // pred_check_branch
      %71 = sbr.rel (0) target = $region33
    $region32: #{tpu_custom_call.1} parent=1 // pred_region
      %s73 = ssub.s32 2048, 2048
      %74 = vsyncadd [#allocation9], %s73
      %s75 = sshll.u32 [#allocation10], 4
      %s76 = int_to_ptr.vmem [resolvable:$true] %s75
      %81 = dma.hbm_to_vmem [thread:$0]  %s7, 2048, %s76, [#allocation9], 128, 128, 8
    $region33: #{tpu_custom_call.1} parent=1 // pred_fallthru
      _
    // Predicated region
    $region34: #{tpu_custom_call.1} parent=1 // pred_check
      _
    $region35: #{tpu_custom_call.1} parent=1 // pred_check_branch
      %83 = sbr.rel (0) target = $region37
    $region36: #{tpu_custom_call.1} parent=1 // pred_region
      _
    $region37: #{tpu_custom_call.1} parent=1 // pred_fallthru
      _
    // Predicated region
    $region38: #{tpu_custom_call.1} parent=1 // pred_check
      _
    $region39: #{tpu_custom_call.1} parent=1 // pred_check_branch
      %85 = sbr.rel (0) target = $region41
    $region40: #{tpu_custom_call.1} parent=1 // pred_region
      %86 = dma.done [#allocation3], 128
    $region41: #{tpu_custom_call.1} parent=1 // pred_fallthru
      _
    // Predicated region
    $region42: #{tpu_custom_call.1} parent=1 // pred_check
      _
    $region43: #{tpu_custom_call.1} parent=1 // pred_check_branch
      %88 = sbr.rel (0) target = $region45
    $region44: #{tpu_custom_call.1} parent=1 // pred_region
      %89 = dma.done [#allocation6], 2048
    $region45: #{tpu_custom_call.1} parent=1 // pred_fallthru
      _
    // Predicated region
    $region46: #{tpu_custom_call.1} parent=1 // pred_check
      _
    $region47: #{tpu_custom_call.1} parent=1 // pred_check_branch
      %91 = sbr.rel (0) target = $region49
    $region48: #{tpu_custom_call.1} parent=1 // pred_region
      %92 = dma.done [#allocation6], 2048
    $region49: #{tpu_custom_call.1} parent=1 // pred_fallthru
      _
    // Predicated region
    $region50: #{tpu_custom_call.1} parent=1 // pred_check
      _
    $region51: #{tpu_custom_call.1} parent=1 // pred_check_branch
      %94 = sbr.rel (0) target = $region53
    $region52: #{tpu_custom_call.1} parent=1 // pred_region
      %95 = dma.done [#allocation9], 2048
    $region53: #{tpu_custom_call.1} parent=1 // pred_fallthru
      _
    // Predicated region
    $region54: #{tpu_custom_call.1} parent=1 // pred_check
      _
    $region55: #{tpu_custom_call.1} parent=1 // pred_check_branch
      %97 = sbr.rel (0) target = $region57
    $region56: #{tpu_custom_call.1} parent=1 // pred_region
      %98 = dma.done [#allocation9], 2048
    $region57: #{tpu_custom_call.1} parent=1 // pred_fallthru
      _
    %v99 = vld [vmem:[#allocation2] sm:$0xff]
    %v100 = vld [vmem:[#allocation5] sm:$0xff]
    %v101 = vld [vmem:[#allocation5 + $0x8] sm:$0xff]
    %v102 = vld [vmem:[#allocation5 + $0x10] sm:$0xff]
    %v103 = vld [vmem:[#allocation5 + $0x18] sm:$0xff]
    %v104 = vld [vmem:[#allocation5 + $0x20] sm:$0xff]
    %v105 = vld [vmem:[#allocation5 + $0x28] sm:$0xff]
    %v106 = vld [vmem:[#allocation5 + $0x30] sm:$0xff]
    %v107 = vld [vmem:[#allocation5 + $0x38] sm:$0xff]
    %v108 = vld [vmem:[#allocation5 + $0x40] sm:$0xff]
    %v109 = vld [vmem:[#allocation5 + $0x48] sm:$0xff]
    %v110 = vld [vmem:[#allocation5 + $0x50] sm:$0xff]
    %v111 = vld [vmem:[#allocation5 + $0x58] sm:$0xff]
    %v112 = vld [vmem:[#allocation5 + $0x60] sm:$0xff]
    %v113 = vld [vmem:[#allocation5 + $0x68] sm:$0xff]
    %v114 = vld [vmem:[#allocation5 + $0x70] sm:$0xff]
    %v115 = vld [vmem:[#allocation5 + $0x78] sm:$0xff]
    %v116 = vld [vmem:[%s2] sm:$0x1]
    %v118 = vlaneseq
    %v119 = vshrl.u32 %v118, 7
    %v120 = vsub.s32 0, %v119
    %v121 = vrot.slane %v116, %v120
    %123 = vmatprep.subr.mxu0 0.0
    %124 = vmatpush1.msra.mxu0 %v100
    %125 = vmatprep.subr.mxu0 0.0
    %126 = vmatpush1.msra.mxu0 %v101
    %127 = vmatprep.subr.mxu0 0.0
    %128 = vmatpush1.msra.mxu0 %v102
    %129 = vmatprep.subr.mxu0 0.0
    %130 = vmatpush1.msra.mxu0 %v103
    %131 = vmatprep.subr.mxu0 0.0
    %132 = vmatpush1.msra.mxu0 %v104
    %133 = vmatprep.subr.mxu0 0.0
    %134 = vmatpush1.msra.mxu0 %v105
    %135 = vmatprep.subr.mxu0 0.0
    %136 = vmatpush1.msra.mxu0 %v106
    %137 = vmatprep.subr.mxu0 0.0
    %138 = vmatpush1.msra.mxu0 %v107
    %139 = vmatprep.subr.mxu0 0.0
    %140 = vmatpush1.msra.mxu0 %v108
    %141 = vmatprep.subr.mxu0 0.0
    %142 = vmatpush1.msra.mxu0 %v109
    %143 = vmatprep.subr.mxu0 0.0
    %144 = vmatpush1.msra.mxu0 %v110
    %145 = vmatprep.subr.mxu0 0.0
    %146 = vmatpush1.msra.mxu0 %v111
    %147 = vmatprep.subr.mxu0 0.0
    %148 = vmatpush1.msra.mxu0 %v112
    %149 = vmatprep.subr.mxu0 0.0
    %150 = vmatpush1.msra.mxu0 %v113
    %151 = vmatprep.subr.mxu0 0.0
    %152 = vmatpush1.msra.mxu0 %v114
    %153 = vmatprep.subr.mxu0 0.0
    %154 = vmatpush1.msra.mxu0 %v115
    %155 = vmatprep.subr.mxu0 0.0
    %156 = vmatpush1.msra.mxu0 0.0
    %157 = vmatprep.subr.mxu0 0.0
    %158 = vmatpush1.msra.mxu0 0.0
    %159 = vmatprep.subr.mxu0 0.0
    %160 = vmatpush1.msra.mxu0 0.0
    %161 = vmatprep.subr.mxu0 0.0
    %162 = vmatpush1.msra.mxu0 0.0
    %163 = vmatprep.subr.mxu0 0.0
    %164 = vmatpush1.msra.mxu0 0.0
    %165 = vmatprep.subr.mxu0 0.0
    %166 = vmatpush1.msra.mxu0 0.0
    %167 = vmatprep.subr.mxu0 0.0
    %168 = vmatpush1.msra.mxu0 0.0
    %169 = vmatprep.subr.mxu0 0.0
    %170 = vmatpush1.msra.mxu0 0.0
    %171 = vmatprep.subr.mxu0 0.0
    %172 = vmatpush1.msra.mxu0 0.0
    %173 = vmatprep.subr.mxu0 0.0
    %174 = vmatpush1.msra.mxu0 0.0
    %175 = vmatprep.subr.mxu0 0.0
    %176 = vmatpush1.msra.mxu0 0.0
    %177 = vmatprep.subr.mxu0 0.0
    %178 = vmatpush1.msra.mxu0 0.0
    %179 = vmatprep.subr.mxu0 0.0
    %180 = vmatpush1.msra.mxu0 0.0
    %181 = vmatprep.subr.mxu0 0.0
    %182 = vmatpush1.msra.mxu0 0.0
    %183 = vmatprep.subr.mxu0 0.0
    %184 = vmatpush1.msra.mxu0 0.0
    %185 = vmatprep.subr.mxu0 0.0
    %186 = vmatpush1.msra.mxu0 0.0
    %187 = vmatprep.mubr.f32.mxu0 0.0
    %188 = vmatmul.mubr.f32.gmra.mrb[0].mxu0 %v99
    %v189 = vpop.f32.mrb[0].mxu0
    %v190 = vadd.f32 %v121, %v189
    %v191 = vpop.f32.mrb[0].mxu0
    %192 = vdwg.mxu0
    %v193 = vmax.f32 %v190, 0.0
    %v194 = vld [vmem:[#allocation7] sm:$0xff]
    %v195 = vld [vmem:[#allocation7 + $0x8] sm:$0xff]
    %v196 = vld [vmem:[#allocation7 + $0x10] sm:$0xff]
    %v197 = vld [vmem:[#allocation7 + $0x18] sm:$0xff]
    %v198 = vld [vmem:[#allocation7 + $0x20] sm:$0xff]
    %v199 = vld [vmem:[#allocation7 + $0x28] sm:$0xff]
    %v200 = vld [vmem:[#allocation7 + $0x30] sm:$0xff]
    %v201 = vld [vmem:[#allocation7 + $0x38] sm:$0xff]
    %v202 = vld [vmem:[#allocation7 + $0x40] sm:$0xff]
    %v203 = vld [vmem:[#allocation7 + $0x48] sm:$0xff]
    %v204 = vld [vmem:[#allocation7 + $0x50] sm:$0xff]
    %v205 = vld [vmem:[#allocation7 + $0x58] sm:$0xff]
    %v206 = vld [vmem:[#allocation7 + $0x60] sm:$0xff]
    %v207 = vld [vmem:[#allocation7 + $0x68] sm:$0xff]
    %v208 = vld [vmem:[#allocation7 + $0x70] sm:$0xff]
    %v209 = vld [vmem:[#allocation7 + $0x78] sm:$0xff]
    %v210 = vld [vmem:[%s4] sm:$0x1]
    %v212 = vlaneseq
    %v213 = vshrl.u32 %v212, 7
    %v214 = vsub.s32 0, %v213
    %v215 = vrot.slane %v210, %v214
    %217 = vmatprep.subr.mxu0 0.0
    %218 = vmatpush1.msra.mxu0 %v194
    %219 = vmatprep.subr.mxu0 0.0
    %220 = vmatpush1.msra.mxu0 %v195
    %221 = vmatprep.subr.mxu0 0.0
    %222 = vmatpush1.msra.mxu0 %v196
    %223 = vmatprep.subr.mxu0 0.0
    %224 = vmatpush1.msra.mxu0 %v197
    %225 = vmatprep.subr.mxu0 0.0
    %226 = vmatpush1.msra.mxu0 %v198
    %227 = vmatprep.subr.mxu0 0.0
    %228 = vmatpush1.msra.mxu0 %v199
    %229 = vmatprep.subr.mxu0 0.0
    %230 = vmatpush1.msra.mxu0 %v200
    %231 = vmatprep.subr.mxu0 0.0
    %232 = vmatpush1.msra.mxu0 %v201
    %233 = vmatprep.subr.mxu0 0.0
    %234 = vmatpush1.msra.mxu0 %v202
    %235 = vmatprep.subr.mxu0 0.0
    %236 = vmatpush1.msra.mxu0 %v203
    %237 = vmatprep.subr.mxu0 0.0
    %238 = vmatpush1.msra.mxu0 %v204
    %239 = vmatprep.subr.mxu0 0.0
    %240 = vmatpush1.msra.mxu0 %v205
    %241 = vmatprep.subr.mxu0 0.0
    %242 = vmatpush1.msra.mxu0 %v206
    %243 = vmatprep.subr.mxu0 0.0
    %244 = vmatpush1.msra.mxu0 %v207
    %245 = vmatprep.subr.mxu0 0.0
    %246 = vmatpush1.msra.mxu0 %v208
    %247 = vmatprep.subr.mxu0 0.0
    %248 = vmatpush1.msra.mxu0 %v209
    %249 = vmatprep.subr.mxu0 0.0
    %250 = vmatpush1.msra.mxu0 0.0
    %251 = vmatprep.subr.mxu0 0.0
    %252 = vmatpush1.msra.mxu0 0.0
    %253 = vmatprep.subr.mxu0 0.0
    %254 = vmatpush1.msra.mxu0 0.0
    %255 = vmatprep.subr.mxu0 0.0
    %256 = vmatpush1.msra.mxu0 0.0
    %257 = vmatprep.subr.mxu0 0.0
    %258 = vmatpush1.msra.mxu0 0.0
    %259 = vmatprep.subr.mxu0 0.0
    %260 = vmatpush1.msra.mxu0 0.0
    %261 = vmatprep.subr.mxu0 0.0
    %262 = vmatpush1.msra.mxu0 0.0
    %263 = vmatprep.subr.mxu0 0.0
    %264 = vmatpush1.msra.mxu0 0.0
    %265 = vmatprep.subr.mxu0 0.0
    %266 = vmatpush1.msra.mxu0 0.0
    %267 = vmatprep.subr.mxu0 0.0
    %268 = vmatpush1.msra.mxu0 0.0
    %269 = vmatprep.subr.mxu0 0.0
    %270 = vmatpush1.msra.mxu0 0.0
    %271 = vmatprep.subr.mxu0 0.0
    %272 = vmatpush1.msra.mxu0 0.0
    %273 = vmatprep.subr.mxu0 0.0
    %274 = vmatpush1.msra.mxu0 0.0
    %275 = vmatprep.subr.mxu0 0.0
    %276 = vmatpush1.msra.mxu0 0.0
    %277 = vmatprep.subr.mxu0 0.0
    %278 = vmatpush1.msra.mxu0 0.0
    %279 = vmatprep.subr.mxu0 0.0
    %280 = vmatpush1.msra.mxu0 0.0
    %281 = vmatprep.mubr.f32.mxu0 0.0
    %282 = vmatmul.mubr.f32.gmra.mrb[0].mxu0 %v193
    %v283 = vpop.f32.mrb[0].mxu0
    %v284 = vadd.f32 %v215, %v283
    %v285 = vpop.f32.mrb[0].mxu0
    %286 = vdwg.mxu0
    %v287 = vld [vmem:[#allocation8] sm:$0xff]
    %v288 = vld [vmem:[#allocation8 + $0x8] sm:$0xff]
    %v289 = vld [vmem:[#allocation8 + $0x10] sm:$0xff]
    %v290 = vld [vmem:[#allocation8 + $0x18] sm:$0xff]
    %v291 = vld [vmem:[#allocation8 + $0x20] sm:$0xff]
    %v292 = vld [vmem:[#allocation8 + $0x28] sm:$0xff]
    %v293 = vld [vmem:[#allocation8 + $0x30] sm:$0xff]
    %v294 = vld [vmem:[#allocation8 + $0x38] sm:$0xff]
    %v295 = vld [vmem:[#allocation8 + $0x40] sm:$0xff]
    %v296 = vld [vmem:[#allocation8 + $0x48] sm:$0xff]
    %v297 = vld [vmem:[#allocation8 + $0x50] sm:$0xff]
    %v298 = vld [vmem:[#allocation8 + $0x58] sm:$0xff]
    %v299 = vld [vmem:[#allocation8 + $0x60] sm:$0xff]
    %v300 = vld [vmem:[#allocation8 + $0x68] sm:$0xff]
    %v301 = vld [vmem:[#allocation8 + $0x70] sm:$0xff]
    %v302 = vld [vmem:[#allocation8 + $0x78] sm:$0xff]
    %v303 = vld [vmem:[%s6] sm:$0x1]
    %v305 = vlaneseq
    %v306 = vshrl.u32 %v305, 7
    %v307 = vsub.s32 0, %v306
    %v308 = vrot.slane %v303, %v307
    %310 = vmatprep.subr.mxu0 0.0
    %311 = vmatpush1.msra.mxu0 %v287
    %312 = vmatprep.subr.mxu0 0.0
    %313 = vmatpush1.msra.mxu0 %v288
    %314 = vmatprep.subr.mxu0 0.0
    %315 = vmatpush1.msra.mxu0 %v289
    %316 = vmatprep.subr.mxu0 0.0
    %317 = vmatpush1.msra.mxu0 %v290
    %318 = vmatprep.subr.mxu0 0.0
    %319 = vmatpush1.msra.mxu0 %v291
    %320 = vmatprep.subr.mxu0 0.0
    %321 = vmatpush1.msra.mxu0 %v292
    %322 = vmatprep.subr.mxu0 0.0
    %323 = vmatpush1.msra.mxu0 %v293
    %324 = vmatprep.subr.mxu0 0.0
    %325 = vmatpush1.msra.mxu0 %v294
    %326 = vmatprep.subr.mxu0 0.0
    %327 = vmatpush1.msra.mxu0 %v295
    %328 = vmatprep.subr.mxu0 0.0
    %329 = vmatpush1.msra.mxu0 %v296
    %330 = vmatprep.subr.mxu0 0.0
    %331 = vmatpush1.msra.mxu0 %v297
    %332 = vmatprep.subr.mxu0 0.0
    %333 = vmatpush1.msra.mxu0 %v298
    %334 = vmatprep.subr.mxu0 0.0
    %335 = vmatpush1.msra.mxu0 %v299
    %336 = vmatprep.subr.mxu0 0.0
    %337 = vmatpush1.msra.mxu0 %v300
    %338 = vmatprep.subr.mxu0 0.0
    %339 = vmatpush1.msra.mxu0 %v301
    %340 = vmatprep.subr.mxu0 0.0
    %341 = vmatpush1.msra.mxu0 %v302
    %342 = vmatprep.subr.mxu0 0.0
    %343 = vmatpush1.msra.mxu0 0.0
    %344 = vmatprep.subr.mxu0 0.0
    %345 = vmatpush1.msra.mxu0 0.0
    %346 = vmatprep.subr.mxu0 0.0
    %347 = vmatpush1.msra.mxu0 0.0
    %348 = vmatprep.subr.mxu0 0.0
    %349 = vmatpush1.msra.mxu0 0.0
    %350 = vmatprep.subr.mxu0 0.0
    %351 = vmatpush1.msra.mxu0 0.0
    %352 = vmatprep.subr.mxu0 0.0
    %353 = vmatpush1.msra.mxu0 0.0
    %354 = vmatprep.subr.mxu0 0.0
    %355 = vmatpush1.msra.mxu0 0.0
    %356 = vmatprep.subr.mxu0 0.0
    %357 = vmatpush1.msra.mxu0 0.0
    %358 = vmatprep.subr.mxu0 0.0
    %359 = vmatpush1.msra.mxu0 0.0
    %360 = vmatprep.subr.mxu0 0.0
    %361 = vmatpush1.msra.mxu0 0.0
    %362 = vmatprep.subr.mxu0 0.0
    %363 = vmatpush1.msra.mxu0 0.0
    %364 = vmatprep.subr.mxu0 0.0
    %365 = vmatpush1.msra.mxu0 0.0
    %366 = vmatprep.subr.mxu0 0.0
    %367 = vmatpush1.msra.mxu0 0.0
    %368 = vmatprep.subr.mxu0 0.0
    %369 = vmatpush1.msra.mxu0 0.0
    %370 = vmatprep.subr.mxu0 0.0
    %371 = vmatpush1.msra.mxu0 0.0
    %372 = vmatprep.subr.mxu0 0.0
    %373 = vmatpush1.msra.mxu0 0.0
    %374 = vmatprep.mubr.f32.mxu0 0.0
    %375 = vmatmul.mubr.f32.gmra.mrb[0].mxu0 %v284
    %v376 = vpop.f32.mrb[0].mxu0
    %v377 = vadd.f32 %v308, %v376
    %v378 = vpop.f32.mrb[0].mxu0
    %379 = vdwg.mxu0
    %v380 = vmax.f32 %v377, 0.0
    %v381 = vld [vmem:[#allocation10] sm:$0xff]
    %v382 = vld [vmem:[#allocation10 + $0x8] sm:$0xff]
    %v383 = vld [vmem:[#allocation10 + $0x10] sm:$0xff]
    %v384 = vld [vmem:[#allocation10 + $0x18] sm:$0xff]
    %v385 = vld [vmem:[#allocation10 + $0x20] sm:$0xff]
    %v386 = vld [vmem:[#allocation10 + $0x28] sm:$0xff]
    %v387 = vld [vmem:[#allocation10 + $0x30] sm:$0xff]
    %v388 = vld [vmem:[#allocation10 + $0x38] sm:$0xff]
    %v389 = vld [vmem:[#allocation10 + $0x40] sm:$0xff]
    %v390 = vld [vmem:[#allocation10 + $0x48] sm:$0xff]
    %v391 = vld [vmem:[#allocation10 + $0x50] sm:$0xff]
    %v392 = vld [vmem:[#allocation10 + $0x58] sm:$0xff]
    %v393 = vld [vmem:[#allocation10 + $0x60] sm:$0xff]
    %v394 = vld [vmem:[#allocation10 + $0x68] sm:$0xff]
    %v395 = vld [vmem:[#allocation10 + $0x70] sm:$0xff]
    %v396 = vld [vmem:[#allocation10 + $0x78] sm:$0xff]
    %v397 = vld [vmem:[%s8] sm:$0x1]
    %v399 = vlaneseq
    %v400 = vshrl.u32 %v399, 7
    %v401 = vsub.s32 0, %v400
    %v402 = vrot.slane %v397, %v401
    %404 = vmatprep.subr.mxu0 0.0
    %405 = vmatpush1.msra.mxu0 %v381
    %406 = vmatprep.subr.mxu0 0.0
    %407 = vmatpush1.msra.mxu0 %v382
    %408 = vmatprep.subr.mxu0 0.0
    %409 = vmatpush1.msra.mxu0 %v383
    %410 = vmatprep.subr.mxu0 0.0
    %411 = vmatpush1.msra.mxu0 %v384
    %412 = vmatprep.subr.mxu0 0.0
    %413 = vmatpush1.msra.mxu0 %v385
    %414 = vmatprep.subr.mxu0 0.0
    %415 = vmatpush1.msra.mxu0 %v386
    %416 = vmatprep.subr.mxu0 0.0
    %417 = vmatpush1.msra.mxu0 %v387
    %418 = vmatprep.subr.mxu0 0.0
    %419 = vmatpush1.msra.mxu0 %v388
    %420 = vmatprep.subr.mxu0 0.0
    %421 = vmatpush1.msra.mxu0 %v389
    %422 = vmatprep.subr.mxu0 0.0
    %423 = vmatpush1.msra.mxu0 %v390
    %424 = vmatprep.subr.mxu0 0.0
    %425 = vmatpush1.msra.mxu0 %v391
    %426 = vmatprep.subr.mxu0 0.0
    %427 = vmatpush1.msra.mxu0 %v392
    %428 = vmatprep.subr.mxu0 0.0
    %429 = vmatpush1.msra.mxu0 %v393
    %430 = vmatprep.subr.mxu0 0.0
    %431 = vmatpush1.msra.mxu0 %v394
    %432 = vmatprep.subr.mxu0 0.0
    %433 = vmatpush1.msra.mxu0 %v395
    %434 = vmatprep.subr.mxu0 0.0
    %435 = vmatpush1.msra.mxu0 %v396
    %436 = vmatprep.subr.mxu0 0.0
    %437 = vmatpush1.msra.mxu0 0.0
    %438 = vmatprep.subr.mxu0 0.0
    %439 = vmatpush1.msra.mxu0 0.0
    %440 = vmatprep.subr.mxu0 0.0
    %441 = vmatpush1.msra.mxu0 0.0
    %442 = vmatprep.subr.mxu0 0.0
    %443 = vmatpush1.msra.mxu0 0.0
    %444 = vmatprep.subr.mxu0 0.0
    %445 = vmatpush1.msra.mxu0 0.0
    %446 = vmatprep.subr.mxu0 0.0
    %447 = vmatpush1.msra.mxu0 0.0
    %448 = vmatprep.subr.mxu0 0.0
    %449 = vmatpush1.msra.mxu0 0.0
    %450 = vmatprep.subr.mxu0 0.0
    %451 = vmatpush1.msra.mxu0 0.0
    %452 = vmatprep.subr.mxu0 0.0
    %453 = vmatpush1.msra.mxu0 0.0
    %454 = vmatprep.subr.mxu0 0.0
    %455 = vmatpush1.msra.mxu0 0.0
    %456 = vmatprep.subr.mxu0 0.0
    %457 = vmatpush1.msra.mxu0 0.0
    %458 = vmatprep.subr.mxu0 0.0
    %459 = vmatpush1.msra.mxu0 0.0
    %460 = vmatprep.subr.mxu0 0.0
    %461 = vmatpush1.msra.mxu0 0.0
    %462 = vmatprep.subr.mxu0 0.0
    %463 = vmatpush1.msra.mxu0 0.0
    %464 = vmatprep.subr.mxu0 0.0
    %465 = vmatpush1.msra.mxu0 0.0
    %466 = vmatprep.subr.mxu0 0.0
    %467 = vmatpush1.msra.mxu0 0.0
    %468 = vmatprep.mubr.f32.mxu0 0.0
    %469 = vmatmul.mubr.f32.gmra.mrb[0].mxu0 %v380
    %v470 = vpop.f32.mrb[0].mxu0
    %v471 = vadd.f32 %v402, %v470
    %v472 = vpop.f32.mrb[0].mxu0
    %473 = vdwg.mxu0
    %474 = vst [vmem:[#allocation11] sm:$0xff] %v471
    // Predicated region
    $region58: #{tpu_custom_call.1} parent=1 // pred_check
      _
    $region59: #{tpu_custom_call.1} parent=1 // pred_check_branch
      %476 = sbr.rel (0) target = $region61
    $region60: #{tpu_custom_call.1} parent=1 // pred_region
      %s478 = ssub.s32 128, 128
      %479 = vsyncadd [#allocation4], %s478
      %s481 = sshll.u32 [#allocation11], 4
      %s482 = int_to_ptr.vmem [resolvable:$true] %s481
      %484 = dma.vmem_to_hbm [thread:$0]  %s482, 128, %s9, [#allocation4]
    $region61: #{tpu_custom_call.1} parent=1 // pred_fallthru
      _
    // Predicated region
    $region62: #{tpu_custom_call.1} parent=1 // pred_check
      _
    $region63: #{tpu_custom_call.1} parent=1 // pred_check_branch
      %486 = sbr.rel (0) target = $region65
    $region64: #{tpu_custom_call.1} parent=1 // pred_region
      %487 = dma.done [#allocation4], 128
    $region65: #{tpu_custom_call.1} parent=1 // pred_fallthru
      _
    %488 = vsyncpa [#allocation3], 1
    %489 = vsyncpa [#allocation6], 1
    %490 = vsyncpa [#allocation9], 1
    %491 = vsyncpa [#allocation4], 1

// kernel: tpu_custom_call.1
$region0: #{tpu_custom_call.1}
  #allocation0 [shape = 'u32[]', space=smem, size = 0x4, offset = 0x4, fixed_abs, tag = 'smem constant byte address 0x4 - core index']
  #allocation1 [shape = 'u32[144,128]{1,0:T(1,128)}', space=vmem, size = 0x12000, scoped, tag = 'internal scratch']
  %s0 = inlined_call_operand.hbm [shape: f32[8,128], index: 0, kind: input, shape index: {}]
  %s1 = inlined_call_operand.hbm [shape: f32[128,128], index: 1, kind: input, shape index: {}]
  %s2 = inlined_call_operand.vmem [shape: f32[1,128], index: 2, kind: input, shape index: {}]
  %s3 = inlined_call_operand.hbm [shape: f32[128,128], index: 3, kind: input, shape index: {}]
  %s4 = inlined_call_operand.vmem [shape: f32[1,128], index: 4, kind: input, shape index: {}]
  %s5 = inlined_call_operand.hbm [shape: f32[128,128], index: 5, kind: input, shape index: {}]
  %s6 = inlined_call_operand.vmem [shape: f32[1,128], index: 6, kind: input, shape index: {}]
  %s7 = inlined_call_operand.hbm [shape: f32[128,128], index: 7, kind: input, shape index: {}]
  %s8 = inlined_call_operand.vmem [shape: f32[1,128], index: 8, kind: input, shape index: {}]
  %s9 = inlined_call_operand.hbm [shape: f32[8,128], index: 9, kind: output, shape index: {}]
  %s10 = sld [smem:[#allocation0]]
  $region66: #{tpu_custom_call.1} parent=0
    _
  %s12 = ssub.s32 1, %s10
  %s13 = scalar_select 0, %s12, %s10
  $region1: #{tpu_custom_call.1} parent=0
    #allocation2 [shape = 'u8[4096]{0}', space=vmem, size = 0x1000, scoped, tag = 'input window, operand 0, single buffered']
    #allocation3 [shape = 's32[1]{0}', space=sflag, size = 0x4, scoped, tag = 'scoped memory for tpu_custom_call.1']
    #allocation4 [shape = 's32[1]{0}', space=sflag, size = 0x4, scoped, tag = 'scoped memory for tpu_custom_call.1']
    #allocation5 [shape = 'u8[65536]{0}', space=vmem, size = 0x10000, scoped, tag = 'input window, operand 1, single buffered']
    #allocation6 [shape = 's32[1]{0}', space=sflag, size = 0x4, scoped, tag = 'scoped memory for tpu_custom_call.1']
    #allocation7 [shape = 'u8[65536]{0}', space=vmem, size = 0x10000, scoped, tag = 'input window, operand 3, single buffered']
    #allocation8 [shape = 'u8[65536]{0}', space=vmem, size = 0x10000, scoped, tag = 'input window, operand 5, single buffered']
    #allocation9 [shape = 's32[1]{0}', space=sflag, size = 0x4, scoped, tag = 'scoped memory for tpu_custom_call.1']
    #allocation10 [shape = 'u8[65536]{0}', space=vmem, size = 0x10000, scoped, tag = 'input window, operand 7, single buffered']
    #allocation11 [shape = 'u8[4096]{0}', space=vmem, size = 0x1000, scoped, tag = 'output window, operand 0, single buffered']
    %14 = vsyncpa [#allocation3], 0
    %15 = vsyncpa [#allocation6], 0
    %16 = vsyncpa [#allocation9], 0
    %17 = vsyncpa [#allocation4], 0
    // Predicated region
    $region2: #{tpu_custom_call.1} parent=1 // pred_check
      _
    $region3: #{tpu_custom_call.1} parent=1 // pred_check_branch
      %19 = sbr.rel (0) target = $region5
    $region4: #{tpu_custom_call.1} parent=1 // pred_region
      %s21 = ssub.s32 128, 128
      %22 = vsyncadd [#allocation3], %s21
      %s24 = sshll.u32 [#allocation2], 4
      %s25 = int_to_ptr.vmem [resolvable:$true] %s24
      %27 = dma.hbm_to_vmem [thread:$0]  %s0, 128, %s25, [#allocation3]
    $region5: #{tpu_custom_call.1} parent=1 // pred_fallthru
      _
    // Predicated region
    $region6: #{tpu_custom_call.1} parent=1 // pred_check
      _
    $region7: #{tpu_custom_call.1} parent=1 // pred_check_branch
      %29 = sbr.rel (0) target = $region9
    $region8: #{tpu_custom_call.1} parent=1 // pred_region
      %s31 = ssub.s32 2048, 2048
      %32 = vsyncadd [#allocation6], %s31
      %s33 = sshll.u32 [#allocation5], 4
      %s34 = int_to_ptr.vmem [resolvable:$true] %s33
      %39 = dma.hbm_to_vmem [thread:$0]  %s1, 2048, %s34, [#allocation6], 128, 128, 8
    $region9: #{tpu_custom_call.1} parent=1 // pred_fallthru
      _
    // Predicated region
    $region10: #{tpu_custom_call.1} parent=1 // pred_check
      _
    $region11: #{tpu_custom_call.1} parent=1 // pred_check_branch
      %41 = sbr.rel (0) target = $region13
    $region12: #{tpu_custom_call.1} parent=1 // pred_region
      _
    $region13: #{tpu_custom_call.1} parent=1 // pred_fallthru
      _
    // Predicated region
    $region14: #{tpu_custom_call.1} parent=1 // pred_check
      _
    $region15: #{tpu_custom_call.1} parent=1 // pred_check_branch
      %43 = sbr.rel (0) target = $region17
    $region16: #{tpu_custom_call.1} parent=1 // pred_region
      %s45 = ssub.s32 2048, 2048
      %46 = vsyncadd [#allocation6], %s45
      %s47 = sshll.u32 [#allocation7], 4
      %s48 = int_to_ptr.vmem [resolvable:$true] %s47
      %53 = dma.hbm_to_vmem [thread:$0]  %s3, 2048, %s48, [#allocation6], 128, 128, 8
    $region17: #{tpu_custom_call.1} parent=1 // pred_fallthru
      _
    // Predicated region
    $region18: #{tpu_custom_call.1} parent=1 // pred_check
      _
    $region19: #{tpu_custom_call.1} parent=1 // pred_check_branch
      %55 = sbr.rel (0) target = $region21
    $region20: #{tpu_custom_call.1} parent=1 // pred_region
      _
    $region21: #{tpu_custom_call.1} parent=1 // pred_fallthru
      _
    // Predicated region
    $region22: #{tpu_custom_call.1} parent=1 // pred_check
      _
    $region23: #{tpu_custom_call.1} parent=1 // pred_check_branch
      %57 = sbr.rel (0) target = $region25
    $region24: #{tpu_custom_call.1} parent=1 // pred_region
      %s59 = ssub.s32 2048, 2048
      %60 = vsyncadd [#allocation9], %s59
      %s61 = sshll.u32 [#allocation8], 4
      %s62 = int_to_ptr.vmem [resolvable:$true] %s61
      %67 = dma.hbm_to_vmem [thread:$0]  %s5, 2048, %s62, [#allocation9], 128, 128, 8
    $region25: #{tpu_custom_call.1} parent=1 // pred_fallthru
      _
    // Predicated region
    $region26: #{tpu_custom_call.1} parent=1 // pred_check
      _
    $region27: #{tpu_custom_call.1} parent=1 // pred_check_branch
      %69 = sbr.rel (0) target = $region29
    $region28: #{tpu_custom_call.1} parent=1 // pred_region
      _
    $region29: #{tpu_custom_call.1} parent=1 // pred_fallthru
      _
    // Predicated region
    $region30: #{tpu_custom_call.1} parent=1 // pred_check
      _
    $region31: #{tpu_custom_call.1} parent=1 // pred_check_branch
      %71 = sbr.rel (0) target = $region33
    $region32: #{tpu_custom_call.1} parent=1 // pred_region
      %s73 = ssub.s32 2048, 2048
      %74 = vsyncadd [#allocation9], %s73
      %s75 = sshll.u32 [#allocation10], 4
      %s76 = int_to_ptr.vmem [resolvable:$true] %s75
      %81 = dma.hbm_to_vmem [thread:$0]  %s7, 2048, %s76, [#allocation9], 128, 128, 8
    $region33: #{tpu_custom_call.1} parent=1 // pred_fallthru
      _
    // Predicated region
    $region34: #{tpu_custom_call.1} parent=1 // pred_check
      _
    $region35: #{tpu_custom_call.1} parent=1 // pred_check_branch
      %83 = sbr.rel (0) target = $region37
    $region36: #{tpu_custom_call.1} parent=1 // pred_region
      _
    $region37: #{tpu_custom_call.1} parent=1 // pred_fallthru
      _
    // Predicated region
    $region38: #{tpu_custom_call.1} parent=1 // pred_check
      _
    $region39: #{tpu_custom_call.1} parent=1 // pred_check_branch
      %85 = sbr.rel (0) target = $region41
    $region40: #{tpu_custom_call.1} parent=1 // pred_region
      %86 = dma.done [#allocation3], 128
    $region41: #{tpu_custom_call.1} parent=1 // pred_fallthru
      _
    // Predicated region
    $region42: #{tpu_custom_call.1} parent=1 // pred_check
      _
    $region43: #{tpu_custom_call.1} parent=1 // pred_check_branch
      %88 = sbr.rel (0) target = $region45
    $region44: #{tpu_custom_call.1} parent=1 // pred_region
      %89 = dma.done [#allocation6], 2048
    $region45: #{tpu_custom_call.1} parent=1 // pred_fallthru
      _
    // Predicated region
    $region46: #{tpu_custom_call.1} parent=1 // pred_check
      _
    $region47: #{tpu_custom_call.1} parent=1 // pred_check_branch
      %91 = sbr.rel (0) target = $region49
    $region48: #{tpu_custom_call.1} parent=1 // pred_region
      %92 = dma.done [#allocation6], 2048
    $region49: #{tpu_custom_call.1} parent=1 // pred_fallthru
      _
    // Predicated region
    $region50: #{tpu_custom_call.1} parent=1 // pred_check
      _
    $region51: #{tpu_custom_call.1} parent=1 // pred_check_branch
      %94 = sbr.rel (0) target = $region53
    $region52: #{tpu_custom_call.1} parent=1 // pred_region
      %95 = dma.done [#allocation9], 2048
    $region53: #{tpu_custom_call.1} parent=1 // pred_fallthru
      _
    // Predicated region
    $region54: #{tpu_custom_call.1} parent=1 // pred_check
      _
    $region55: #{tpu_custom_call.1} parent=1 // pred_check_branch
      %97 = sbr.rel (0) target = $region57
    $region56: #{tpu_custom_call.1} parent=1 // pred_region
      %98 = dma.done [#allocation9], 2048
    $region57: #{tpu_custom_call.1} parent=1 // pred_fallthru
      _
    %v99 = vld [vmem:[#allocation2] sm:$0xff]
    %v100 = vld [vmem:[#allocation5] sm:$0xff]
    %v101 = vld [vmem:[#allocation5 + $0x8] sm:$0xff]
    %v102 = vld [vmem:[#allocation5 + $0x10] sm:$0xff]
    %v103 = vld [vmem:[#allocation5 + $0x18] sm:$0xff]
    %v104 = vld [vmem:[#allocation5 + $0x20] sm:$0xff]
    %v105 = vld [vmem:[#allocation5 + $0x28] sm:$0xff]
    %v106 = vld [vmem:[#allocation5 + $0x30] sm:$0xff]
    %v107 = vld [vmem:[#allocation5 + $0x38] sm:$0xff]
    %v108 = vld [vmem:[#allocation5 + $0x40] sm:$0xff]
    %v109 = vld [vmem:[#allocation5 + $0x48] sm:$0xff]
    %v110 = vld [vmem:[#allocation5 + $0x50] sm:$0xff]
    %v111 = vld [vmem:[#allocation5 + $0x58] sm:$0xff]
    %v112 = vld [vmem:[#allocation5 + $0x60] sm:$0xff]
    %v113 = vld [vmem:[#allocation5 + $0x68] sm:$0xff]
    %v114 = vld [vmem:[#allocation5 + $0x70] sm:$0xff]
    %v115 = vld [vmem:[#allocation5 + $0x78] sm:$0xff]
    %v116 = vld [vmem:[%s2] sm:$0x1]
    %v118 = vlaneseq
    %v119 = vshrl.u32 %v118, 7
    %v120 = vsub.s32 0, %v119
    %v121 = vrot.slane %v116, %v120
    %123 = vmatprep.subr.mxu0 0.0
    %124 = vmatpush1.msra.mxu0 %v100
    %125 = vmatprep.subr.mxu0 0.0
    %126 = vmatpush1.msra.mxu0 %v101
    %127 = vmatprep.subr.mxu0 0.0
    %128 = vmatpush1.msra.mxu0 %v102
    %129 = vmatprep.subr.mxu0 0.0
    %130 = vmatpush1.msra.mxu0 %v103
    %131 = vmatprep.subr.mxu0 0.0
    %132 = vmatpush1.msra.mxu0 %v104
    %133 = vmatprep.subr.mxu0 0.0
    %134 = vmatpush1.msra.mxu0 %v105
    %135 = vmatprep.subr.mxu0 0.0
    %136 = vmatpush1.msra.mxu0 %v106
    %137 = vmatprep.subr.mxu0 0.0
    %138 = vmatpush1.msra.mxu0 %v107
    %139 = vmatprep.subr.mxu0 0.0
    %140 = vmatpush1.msra.mxu0 %v108
    %141 = vmatprep.subr.mxu0 0.0
    %142 = vmatpush1.msra.mxu0 %v109
    %143 = vmatprep.subr.mxu0 0.0
    %144 = vmatpush1.msra.mxu0 %v110
    %145 = vmatprep.subr.mxu0 0.0
    %146 = vmatpush1.msra.mxu0 %v111
    %147 = vmatprep.subr.mxu0 0.0
    %148 = vmatpush1.msra.mxu0 %v112
    %149 = vmatprep.subr.mxu0 0.0
    %150 = vmatpush1.msra.mxu0 %v113
    %151 = vmatprep.subr.mxu0 0.0
    %152 = vmatpush1.msra.mxu0 %v114
    %153 = vmatprep.subr.mxu0 0.0
    %154 = vmatpush1.msra.mxu0 %v115
    %155 = vmatprep.subr.mxu0 0.0
    %156 = vmatpush1.msra.mxu0 0.0
    %157 = vmatprep.subr.mxu0 0.0
    %158 = vmatpush1.msra.mxu0 0.0
    %159 = vmatprep.subr.mxu0 0.0
    %160 = vmatpush1.msra.mxu0 0.0
    %161 = vmatprep.subr.mxu0 0.0
    %162 = vmatpush1.msra.mxu0 0.0
    %163 = vmatprep.subr.mxu0 0.0
    %164 = vmatpush1.msra.mxu0 0.0
    %165 = vmatprep.subr.mxu0 0.0
    %166 = vmatpush1.msra.mxu0 0.0
    %167 = vmatprep.subr.mxu0 0.0
    %168 = vmatpush1.msra.mxu0 0.0
    %169 = vmatprep.subr.mxu0 0.0
    %170 = vmatpush1.msra.mxu0 0.0
    %171 = vmatprep.subr.mxu0 0.0
    %172 = vmatpush1.msra.mxu0 0.0
    %173 = vmatprep.subr.mxu0 0.0
    %174 = vmatpush1.msra.mxu0 0.0
    %175 = vmatprep.subr.mxu0 0.0
    %176 = vmatpush1.msra.mxu0 0.0
    %177 = vmatprep.subr.mxu0 0.0
    %178 = vmatpush1.msra.mxu0 0.0
    %179 = vmatprep.subr.mxu0 0.0
    %180 = vmatpush1.msra.mxu0 0.0
    %181 = vmatprep.subr.mxu0 0.0
    %182 = vmatpush1.msra.mxu0 0.0
    %183 = vmatprep.subr.mxu0 0.0
    %184 = vmatpush1.msra.mxu0 0.0
    %185 = vmatprep.subr.mxu0 0.0
    %186 = vmatpush1.msra.mxu0 0.0
    %187 = vmatprep.mubr.f32.mxu0 0.0
    %188 = vmatmul.mubr.f32.gmra.mrb[0].mxu0 %v99
    %v189 = vpop.f32.mrb[0].mxu0
    %v190 = vadd.f32 %v121, %v189
    %v191 = vpop.f32.mrb[0].mxu0
    %192 = vdwg.mxu0
    %v193 = vmax.f32 %v190, 0.0
    %v194 = vld [vmem:[#allocation7] sm:$0xff]
    %v195 = vld [vmem:[#allocation7 + $0x8] sm:$0xff]
    %v196 = vld [vmem:[#allocation7 + $0x10] sm:$0xff]
    %v197 = vld [vmem:[#allocation7 + $0x18] sm:$0xff]
    %v198 = vld [vmem:[#allocation7 + $0x20] sm:$0xff]
    %v199 = vld [vmem:[#allocation7 + $0x28] sm:$0xff]
    %v200 = vld [vmem:[#allocation7 + $0x30] sm:$0xff]
    %v201 = vld [vmem:[#allocation7 + $0x38] sm:$0xff]
    %v202 = vld [vmem:[#allocation7 + $0x40] sm:$0xff]
    %v203 = vld [vmem:[#allocation7 + $0x48] sm:$0xff]
    %v204 = vld [vmem:[#allocation7 + $0x50] sm:$0xff]
    %v205 = vld [vmem:[#allocation7 + $0x58] sm:$0xff]
    %v206 = vld [vmem:[#allocation7 + $0x60] sm:$0xff]
    %v207 = vld [vmem:[#allocation7 + $0x68] sm:$0xff]
    %v208 = vld [vmem:[#allocation7 + $0x70] sm:$0xff]
    %v209 = vld [vmem:[#allocation7 + $0x78] sm:$0xff]
    %v210 = vld [vmem:[%s4] sm:$0x1]
    %v212 = vlaneseq
    %v213 = vshrl.u32 %v212, 7
    %v214 = vsub.s32 0, %v213
    %v215 = vrot.slane %v210, %v214
    %217 = vmatprep.subr.mxu0 0.0
    %218 = vmatpush1.msra.mxu0 %v194
    %219 = vmatprep.subr.mxu0 0.0
    %220 = vmatpush1.msra.mxu0 %v195
    %221 = vmatprep.subr.mxu0 0.0
    %222 = vmatpush1.msra.mxu0 %v196
    %223 = vmatprep.subr.mxu0 0.0
    %224 = vmatpush1.msra.mxu0 %v197
    %225 = vmatprep.subr.mxu0 0.0
    %226 = vmatpush1.msra.mxu0 %v198
    %227 = vmatprep.subr.mxu0 0.0
    %228 = vmatpush1.msra.mxu0 %v199
    %229 = vmatprep.subr.mxu0 0.0
    %230 = vmatpush1.msra.mxu0 %v200
    %231 = vmatprep.subr.mxu0 0.0
    %232 = vmatpush1.msra.mxu0 %v201
    %233 = vmatprep.subr.mxu0 0.0
    %234 = vmatpush1.msra.mxu0 %v202
    %235 = vmatprep.subr.mxu0 0.0
    %236 = vmatpush1.msra.mxu0 %v203
    %237 = vmatprep.subr.mxu0 0.0
    %238 = vmatpush1.msra.mxu0 %v204
    %239 = vmatprep.subr.mxu0 0.0
    %240 = vmatpush1.msra.mxu0 %v205
    %241 = vmatprep.subr.mxu0 0.0
    %242 = vmatpush1.msra.mxu0 %v206
    %243 = vmatprep.subr.mxu0 0.0
    %244 = vmatpush1.msra.mxu0 %v207
    %245 = vmatprep.subr.mxu0 0.0
    %246 = vmatpush1.msra.mxu0 %v208
    %247 = vmatprep.subr.mxu0 0.0
    %248 = vmatpush1.msra.mxu0 %v209
    %249 = vmatprep.subr.mxu0 0.0
    %250 = vmatpush1.msra.mxu0 0.0
    %251 = vmatprep.subr.mxu0 0.0
    %252 = vmatpush1.msra.mxu0 0.0
    %253 = vmatprep.subr.mxu0 0.0
    %254 = vmatpush1.msra.mxu0 0.0
    %255 = vmatprep.subr.mxu0 0.0
    %256 = vmatpush1.msra.mxu0 0.0
    %257 = vmatprep.subr.mxu0 0.0
    %258 = vmatpush1.msra.mxu0 0.0
    %259 = vmatprep.subr.mxu0 0.0
    %260 = vmatpush1.msra.mxu0 0.0
    %261 = vmatprep.subr.mxu0 0.0
    %262 = vmatpush1.msra.mxu0 0.0
    %263 = vmatprep.subr.mxu0 0.0
    %264 = vmatpush1.msra.mxu0 0.0
    %265 = vmatprep.subr.mxu0 0.0
    %266 = vmatpush1.msra.mxu0 0.0
    %267 = vmatprep.subr.mxu0 0.0
    %268 = vmatpush1.msra.mxu0 0.0
    %269 = vmatprep.subr.mxu0 0.0
    %270 = vmatpush1.msra.mxu0 0.0
    %271 = vmatprep.subr.mxu0 0.0
    %272 = vmatpush1.msra.mxu0 0.0
    %273 = vmatprep.subr.mxu0 0.0
    %274 = vmatpush1.msra.mxu0 0.0
    %275 = vmatprep.subr.mxu0 0.0
    %276 = vmatpush1.msra.mxu0 0.0
    %277 = vmatprep.subr.mxu0 0.0
    %278 = vmatpush1.msra.mxu0 0.0
    %279 = vmatprep.subr.mxu0 0.0
    %280 = vmatpush1.msra.mxu0 0.0
    %281 = vmatprep.mubr.f32.mxu0 0.0
    %282 = vmatmul.mubr.f32.gmra.mrb[0].mxu0 %v193
    %v283 = vpop.f32.mrb[0].mxu0
    %v284 = vadd.f32 %v215, %v283
    %v285 = vpop.f32.mrb[0].mxu0
    %286 = vdwg.mxu0
    %v287 = vld [vmem:[#allocation8] sm:$0xff]
    %v288 = vld [vmem:[#allocation8 + $0x8] sm:$0xff]
    %v289 = vld [vmem:[#allocation8 + $0x10] sm:$0xff]
    %v290 = vld [vmem:[#allocation8 + $0x18] sm:$0xff]
    %v291 = vld [vmem:[#allocation8 + $0x20] sm:$0xff]
    %v292 = vld [vmem:[#allocation8 + $0x28] sm:$0xff]
    %v293 = vld [vmem:[#allocation8 + $0x30] sm:$0xff]
    %v294 = vld [vmem:[#allocation8 + $0x38] sm:$0xff]
    %v295 = vld [vmem:[#allocation8 + $0x40] sm:$0xff]
    %v296 = vld [vmem:[#allocation8 + $0x48] sm:$0xff]
    %v297 = vld [vmem:[#allocation8 + $0x50] sm:$0xff]
    %v298 = vld [vmem:[#allocation8 + $0x58] sm:$0xff]
    %v299 = vld [vmem:[#allocation8 + $0x60] sm:$0xff]
    %v300 = vld [vmem:[#allocation8 + $0x68] sm:$0xff]
    %v301 = vld [vmem:[#allocation8 + $0x70] sm:$0xff]
    %v302 = vld [vmem:[#allocation8 + $0x78] sm:$0xff]
    %v303 = vld [vmem:[%s6] sm:$0x1]
    %v305 = vlaneseq
    %v306 = vshrl.u32 %v305, 7
    %v307 = vsub.s32 0, %v306
    %v308 = vrot.slane %v303, %v307
    %310 = vmatprep.subr.mxu0 0.0
    %311 = vmatpush1.msra.mxu0 %v287
    %312 = vmatprep.subr.mxu0 0.0
    %313 = vmatpush1.msra.mxu0 %v288
    %314 = vmatprep.subr.mxu0 0.0
    %315 = vmatpush1.msra.mxu0 %v289
    %316 = vmatprep.subr.mxu0 0.0
    %317 = vmatpush1.msra.mxu0 %v290
    %318 = vmatprep.subr.mxu0 0.0
    %319 = vmatpush1.msra.mxu0 %v291
    %320 = vmatprep.subr.mxu0 0.0
    %321 = vmatpush1.msra.mxu0 %v292
    %322 = vmatprep.subr.mxu0 0.0
    %323 = vmatpush1.msra.mxu0 %v293
    %324 = vmatprep.subr.mxu0 0.0
    %325 = vmatpush1.msra.mxu0 %v294
    %326 = vmatprep.subr.mxu0 0.0
    %327 = vmatpush1.msra.mxu0 %v295
    %328 = vmatprep.subr.mxu0 0.0
    %329 = vmatpush1.msra.mxu0 %v296
    %330 = vmatprep.subr.mxu0 0.0
    %331 = vmatpush1.msra.mxu0 %v297
    %332 = vmatprep.subr.mxu0 0.0
    %333 = vmatpush1.msra.mxu0 %v298
    %334 = vmatprep.subr.mxu0 0.0
    %335 = vmatpush1.msra.mxu0 %v299
    %336 = vmatprep.subr.mxu0 0.0
    %337 = vmatpush1.msra.mxu0 %v300
    %338 = vmatprep.subr.mxu0 0.0
    %339 = vmatpush1.msra.mxu0 %v301
    %340 = vmatprep.subr.mxu0 0.0
    %341 = vmatpush1.msra.mxu0 %v302
    %342 = vmatprep.subr.mxu0 0.0
    %343 = vmatpush1.msra.mxu0 0.0
    %344 = vmatprep.subr.mxu0 0.0
    %345 = vmatpush1.msra.mxu0 0.0
    %346 = vmatprep.subr.mxu0 0.0
    %347 = vmatpush1.msra.mxu0 0.0
    %348 = vmatprep.subr.mxu0 0.0
    %349 = vmatpush1.msra.mxu0 0.0
    %350 = vmatprep.subr.mxu0 0.0
    %351 = vmatpush1.msra.mxu0 0.0
    %352 = vmatprep.subr.mxu0 0.0
    %353 = vmatpush1.msra.mxu0 0.0
    %354 = vmatprep.subr.mxu0 0.0
    %355 = vmatpush1.msra.mxu0 0.0
    %356 = vmatprep.subr.mxu0 0.0
    %357 = vmatpush1.msra.mxu0 0.0
    %358 = vmatprep.subr.mxu0 0.0
    %359 = vmatpush1.msra.mxu0 0.0
    %360 = vmatprep.subr.mxu0 0.0
    %361 = vmatpush1.msra.mxu0 0.0
    %362 = vmatprep.subr.mxu0 0.0
    %363 = vmatpush1.msra.mxu0 0.0
    %364 = vmatprep.subr.mxu0 0.0
    %365 = vmatpush1.msra.mxu0 0.0
    %366 = vmatprep.subr.mxu0 0.0
    %367 = vmatpush1.msra.mxu0 0.0
    %368 = vmatprep.subr.mxu0 0.0
    %369 = vmatpush1.msra.mxu0 0.0
    %370 = vmatprep.subr.mxu0 0.0
    %371 = vmatpush1.msra.mxu0 0.0
    %372 = vmatprep.subr.mxu0 0.0
    %373 = vmatpush1.msra.mxu0 0.0
    %374 = vmatprep.mubr.f32.mxu0 0.0
    %375 = vmatmul.mubr.f32.gmra.mrb[0].mxu0 %v284
    %v376 = vpop.f32.mrb[0].mxu0
    %v377 = vadd.f32 %v308, %v376
    %v378 = vpop.f32.mrb[0].mxu0
    %379 = vdwg.mxu0
    %v380 = vmax.f32 %v377, 0.0
    %v381 = vld [vmem:[#allocation10] sm:$0xff]
    %v382 = vld [vmem:[#allocation10 + $0x8] sm:$0xff]
    %v383 = vld [vmem:[#allocation10 + $0x10] sm:$0xff]
    %v384 = vld [vmem:[#allocation10 + $0x18] sm:$0xff]
    %v385 = vld [vmem:[#allocation10 + $0x20] sm:$0xff]
    %v386 = vld [vmem:[#allocation10 + $0x28] sm:$0xff]
    %v387 = vld [vmem:[#allocation10 + $0x30] sm:$0xff]
    %v388 = vld [vmem:[#allocation10 + $0x38] sm:$0xff]
    %v389 = vld [vmem:[#allocation10 + $0x40] sm:$0xff]
    %v390 = vld [vmem:[#allocation10 + $0x48] sm:$0xff]
    %v391 = vld [vmem:[#allocation10 + $0x50] sm:$0xff]
    %v392 = vld [vmem:[#allocation10 + $0x58] sm:$0xff]
    %v393 = vld [vmem:[#allocation10 + $0x60] sm:$0xff]
    %v394 = vld [vmem:[#allocation10 + $0x68] sm:$0xff]
    %v395 = vld [vmem:[#allocation10 + $0x70] sm:$0xff]
    %v396 = vld [vmem:[#allocation10 + $0x78] sm:$0xff]
    %v397 = vld [vmem:[%s8] sm:$0x1]
    %v399 = vlaneseq
    %v400 = vshrl.u32 %v399, 7
    %v401 = vsub.s32 0, %v400
    %v402 = vrot.slane %v397, %v401
    %404 = vmatprep.subr.mxu0 0.0
    %405 = vmatpush1.msra.mxu0 %v381
    %406 = vmatprep.subr.mxu0 0.0
    %407 = vmatpush1.msra.mxu0 %v382
    %408 = vmatprep.subr.mxu0 0.0
    %409 = vmatpush1.msra.mxu0 %v383
    %410 = vmatprep.subr.mxu0 0.0
    %411 = vmatpush1.msra.mxu0 %v384
    %412 = vmatprep.subr.mxu0 0.0
    %413 = vmatpush1.msra.mxu0 %v385
    %414 = vmatprep.subr.mxu0 0.0
    %415 = vmatpush1.msra.mxu0 %v386
    %416 = vmatprep.subr.mxu0 0.0
    %417 = vmatpush1.msra.mxu0 %v387
    %418 = vmatprep.subr.mxu0 0.0
    %419 = vmatpush1.msra.mxu0 %v388
    %420 = vmatprep.subr.mxu0 0.0
    %421 = vmatpush1.msra.mxu0 %v389
    %422 = vmatprep.subr.mxu0 0.0
    %423 = vmatpush1.msra.mxu0 %v390
    %424 = vmatprep.subr.mxu0 0.0
    %425 = vmatpush1.msra.mxu0 %v391
    %426 = vmatprep.subr.mxu0 0.0
    %427 = vmatpush1.msra.mxu0 %v392
    %428 = vmatprep.subr.mxu0 0.0
    %429 = vmatpush1.msra.mxu0 %v393
    %430 = vmatprep.subr.mxu0 0.0
    %431 = vmatpush1.msra.mxu0 %v394
    %432 = vmatprep.subr.mxu0 0.0
    %433 = vmatpush1.msra.mxu0 %v395
    %434 = vmatprep.subr.mxu0 0.0
    %435 = vmatpush1.msra.mxu0 %v396
    %436 = vmatprep.subr.mxu0 0.0
    %437 = vmatpush1.msra.mxu0 0.0
    %438 = vmatprep.subr.mxu0 0.0
    %439 = vmatpush1.msra.mxu0 0.0
    %440 = vmatprep.subr.mxu0 0.0
    %441 = vmatpush1.msra.mxu0 0.0
    %442 = vmatprep.subr.mxu0 0.0
    %443 = vmatpush1.msra.mxu0 0.0
    %444 = vmatprep.subr.mxu0 0.0
    %445 = vmatpush1.msra.mxu0 0.0
    %446 = vmatprep.subr.mxu0 0.0
    %447 = vmatpush1.msra.mxu0 0.0
    %448 = vmatprep.subr.mxu0 0.0
    %449 = vmatpush1.msra.mxu0 0.0
    %450 = vmatprep.subr.mxu0 0.0
    %451 = vmatpush1.msra.mxu0 0.0
    %452 = vmatprep.subr.mxu0 0.0
    %453 = vmatpush1.msra.mxu0 0.0
    %454 = vmatprep.subr.mxu0 0.0
    %455 = vmatpush1.msra.mxu0 0.0
    %456 = vmatprep.subr.mxu0 0.0
    %457 = vmatpush1.msra.mxu0 0.0
    %458 = vmatprep.subr.mxu0 0.0
    %459 = vmatpush1.msra.mxu0 0.0
    %460 = vmatprep.subr.mxu0 0.0
    %461 = vmatpush1.msra.mxu0 0.0
    %462 = vmatprep.subr.mxu0 0.0
    %463 = vmatpush1.msra.mxu0 0.0
    %464 = vmatprep.subr.mxu0 0.0
    %465 = vmatpush1.msra.mxu0 0.0
    %466 = vmatprep.subr.mxu0 0.0
    %467 = vmatpush1.msra.mxu0 0.0
    %468 = vmatprep.mubr.f32.mxu0 0.0
    %469 = vmatmul.mubr.f32.gmra.mrb[0].mxu0 %v380
    %v470 = vpop.f32.mrb[0].mxu0
    %v471 = vadd.f32 %v402, %v470
    %v472 = vpop.f32.mrb[0].mxu0
    %473 = vdwg.mxu0
    %474 = vst [vmem:[#allocation11] sm:$0xff] %v471
    // Predicated region
    $region58: #{tpu_custom_call.1} parent=1 // pred_check
      _
    $region59: #{tpu_custom_call.1} parent=1 // pred_check_branch
      %476 = sbr.rel (0) target = $region61
    $region60: #{tpu_custom_call.1} parent=1 // pred_region
      %s478 = ssub.s32 128, 128
      %479 = vsyncadd [#allocation4], %s478
      %s481 = sshll.u32 [#allocation11], 4
      %s482 = int_to_ptr.vmem [resolvable:$true] %s481
      %484 = dma.vmem_to_hbm [thread:$0]  %s482, 128, %s9, [#allocation4]
    $region61: #{tpu_custom_call.1} parent=1 // pred_fallthru
      _
    // Predicated region
    $region62: #{tpu_custom_call.1} parent=1 // pred_check
      _
    $region63: #{tpu_custom_call.1} parent=1 // pred_check_branch
      %486 = sbr.rel (0) target = $region65
    $region64: #{tpu_custom_call.1} parent=1 // pred_region
      %487 = dma.done [#allocation4], 128
    $region65: #{tpu_custom_call.1} parent=1 // pred_fallthru
      _
    %488 = vsyncpa [#allocation3], 1
    %489 = vsyncpa [#allocation6], 1
    %490 = vsyncpa [#allocation9], 1
    %491 = vsyncpa [#allocation4], 1

</llo_original>
